<compile_context>
chip_gen: v7x
topology: tpu7x:2x2x1
jax: 0.10.0
libtpu: 0.0.40
codegen_flags: <defaults>
</compile_context>

<pallas_src>
import functools

import jax
import jax.numpy as jnp
import numpy as np
from jax.experimental import pallas as pl
from jax.experimental.pallas import tpu as pltpu


def _round_up(x, m):
    return ((x + m - 1) // m) * m


# ----------------------------------------------------------------------------
# Fused Pallas kernel: entire RBX2SR forward for one batch image.
#
# Layout: activations are (C, Q) with channels in sublanes and the flattened,
# zero-padded image (row length Wp = W + 2, row-major) in lanes.  Valid output
# pixel (h, w) lives at frame index j = h*Wp + w; a 3x3 tap (kh, kw) is a lane
# shift by kh*Wp + kw.  Everything past the natural (H+2)*Wp padded entries is
# zero slack whose lanes are never used for valid outputs.
# ----------------------------------------------------------------------------
def _rbx2sr_kernel(x_ref,        # (1, Cin, QA)  zero-padded flattened input
                   w3_ref,       # (3*(Cout+mid) + 3*Cout + 3*mid, 3*max(Cin,mid)) folded 3x3 weights
                   w1_ref,       # (2*mid+Cout + 2*Cout, max(Cin,mid))             1x1 weights
                   b_ref,        # (n_bias, 1)                                     packed bias column
                   o_ref,        # (1, Cout, QvP)
                   sB_ref,       # VMEM scratch (2*mid+Cout, QA): stacked 1x1 outputs
                   *, W, Cin, Cout, mid, QvP, QK):
    Wp = W + 2
    MA = Cout + mid              # fused 3x3-on-x output channels (branch 1 | branch 4)
    MB = 2 * mid + Cout          # fused 1x1-on-x output channels (br2 | br3 | br5)

    # static row offsets inside the packed bias column
    oA = 0
    oB = MA
    o_b13 = oB + MB
    o_b131 = o_b13 + Cout
    o_b131c = o_b131 + mid
    o_b31 = o_b131c + Cout
    o_lsc = o_b31 + Cout
    o_lb = o_lsc + Cout

    def bias(o, n):              # (n, 1) column, broadcasts over lanes
        return b_ref[o:o + n, :]

    def conv3x3_fold(read, w_fold, M, b):
        # Only 3 shifted copies of the source (kw = 0, 1, 2); the 3 kh rows of the
        # kernel live in the weight's row blocks and are recovered with 2 shifted
        # adds of the matmul result:  out[:, j] = sum_kh Y[kh*M:(kh+1)*M, j + kh*Wp].
        xkw = jnp.concatenate([read(kw, QK) for kw in range(3)], axis=0)  # (3C, QK)
        y = jnp.dot(w_fold, xkw, preferred_element_type=jnp.float32)      # (3M, QK)
        return (y[0:M, 0:QvP]
                + y[M:2 * M, Wp:Wp + QvP]
                + y[2 * M:3 * M, 2 * Wp:2 * Wp + QvP]) + b

    def rd_x(s, n):
        return x_ref[0, :, s:s + n]

    # ---- ONE matmul for all three 1x1 convs on the zero-padded input -------------
    # rows [0:mid)           branch 2 (c13_k0, c13_b0)
    # rows [mid:2*mid)       branch 3 (c131_k0, c131_b0)
    # rows [2*mid:MB)        branch 5 (lpl_k0, lpl_b0)
    # On zero-padded border lanes the result is just the bias, which reproduces the
    # PyTorch "pad + fill border with b0" exactly.
    sB_ref[...] = (jnp.dot(w1_ref[0:MB, 0:Cin], x_ref[0],
                           preferred_element_type=jnp.float32) + bias(oB, MB))

    # ---- branch 1 + branch 4's 3x3: ONE folded matmul on the shared patches ------
    pA = conv3x3_fold(rd_x, w3_ref[0:3 * MA, 0:3 * Cin], MA, bias(oA, MA))
    acc = pA[0:Cout, :] + rd_x(Wp + 1, QvP)                 # branch 1 + identity residual
    acc = acc + (jnp.dot(w1_ref[MB:MB + Cout, 0:mid], pA[Cout:MA, :],
                         preferred_element_type=jnp.float32) + bias(o_b31, Cout))

    # ---- branch 2: (1x1 -> b0-bordered pad ->) conv3x3 ----------------------------
    def rd_13(s, n):
        return sB_ref[0:mid, s:s + n]
    acc = acc + conv3x3_fold(rd_13, w3_ref[3 * MA:3 * MA + 3 * Cout, 0:3 * mid],
                             Cout, bias(o_b13, Cout))

    # ---- branch 3: (zeropad -> 1x1 ->) conv3x3 -> conv1x1 -------------------------
    def rd_131(s, n):
        return sB_ref[mid:2 * mid, s:s + n]
    t3 = conv3x3_fold(rd_131,
                      w3_ref[3 * MA + 3 * Cout:3 * MA + 3 * Cout + 3 * mid, 0:3 * mid],
                      mid, bias(o_b131, mid))
    acc = acc + (jnp.dot(w1_ref[MB + Cout:MB + 2 * Cout, 0:mid], t3,
                         preferred_element_type=jnp.float32) + bias(o_b131c, Cout))

    # ---- branch 5: (1x1 -> b0-bordered pad ->) depthwise Laplacian ----------------
    def rd_l(s, n):
        return sB_ref[2 * mid:MB, s:s + n]
    lap = (rd_l(1, QvP) + rd_l(Wp, QvP) + rd_l(Wp + 2, QvP) + rd_l(2 * Wp + 1, QvP)
           - 4.0 * rd_l(Wp + 1, QvP))                       # 5 non-zero taps only
    acc = acc + lap * bias(o_lsc, Cout) + bias(o_lb, Cout)

    o_ref[0] = acc                                          # lane-dense (Cout, QvP) store


# ----------------------------------------------------------------------------
# Wrapper: NCHW in / NCHW out, one pallas_call for the whole forward.
# ----------------------------------------------------------------------------
@jax.jit
def rbx2sr_forward(x_nchw, params):
    N, Cin, H, W = x_nchw.shape
    Wp = W + 2
    Qv = H * Wp                              # natural output frame length
    QvP = _round_up(Qv, 128)                 # lane-dense output frame
    QK = 2 * Wp + QvP                        # width of the kw-shifted views
    QA = _round_up(QK + 2, 128)              # lane-dense padded-input / scratch frame

    Cout = params["w_3x3"].shape[-1]
    mid = params["c13_k0"].shape[-1]
    assert Cin == Cout, "identity residual requires inp_planes == out_planes"
    # In-bounds invariants (VMEM refs have NO runtime bounds check):
    assert QK >= 2 * Wp + QvP                # kh-shifted reads of the matmul result
    assert QA >= QK + 2                      # kw-shifted reads of the source frames
    assert QA >= (H + 2) * Wp                # natural padded frame fits in the slab

    # Single wrapper-side pad: zero-pad spatially, flatten, zero-pad the lane axis
    # up to QA (the slack only feeds lanes that are sliced off at the end).
    xp2d = jnp.pad(x_nchw.astype(jnp.float32), ((0, 0), (0, 0), (1, 1), (1, 1)))
    xp = jnp.pad(xp2d.reshape(N, Cin, (H + 2) * Wp),
                 ((0, 0), (0, 0), (0, QA - (H + 2) * Wp)))

    # ---- wrapper-side weight repack (one-time cost in a real deployment) ----------
    def fold3x3(w):   # HWIO (3,3,Ci,Co) -> (3*Co, 3*Ci): rows kh-major/co-minor,
        return jnp.transpose(w, (0, 3, 1, 2)).reshape(3 * w.shape[3], 3 * w.shape[2])

    def pack1x1(w):   # (1,1,Ci,Co) -> (Co, Ci)
        return jnp.transpose(w[0, 0])

    def padcols(a, k):
        return jnp.pad(a, ((0, 0), (0, k - a.shape[1])))

    def col(v):
        return v.reshape(-1, 1).astype(jnp.float32)

    MA, MB = Cout + mid, 2 * mid + Cout
    K3, K1 = 3 * max(Cin, mid), max(Cin, mid)

    # packed folded-3x3 weights: [branch1+branch4 fused | branch2 | branch3]
    wA = fold3x3(jnp.concatenate([params["w_3x3"], params["c31_k0"]], axis=3))
    w3_pack = jnp.concatenate([padcols(wA, K3),
                               padcols(fold3x3(params["c13_k1"]), K3),
                               padcols(fold3x3(params["c131_k1"]), K3)], axis=0)

    # packed 1x1 weights: [fused (c13_k0|c131_k0|lpl_k0) | c31_k1 | c131_k2]
    wB = pack1x1(jnp.concatenate([params["c13_k0"], params["c131_k0"],
                                  params["lpl_k0"]], axis=3))
    w1_pack = jnp.concatenate([padcols(wB, K1),
                               padcols(pack1x1(params["c31_k1"]), K1),
                               padcols(pack1x1(params["c131_k2"]), K1)], axis=0)

    # packed bias column (row order must match the kernel's static offsets)
    bias_pack = jnp.concatenate([
        col(params["b_3x3"]), col(params["c31_b0"]),                      # [0 : MA)
        col(params["c13_b0"]), col(params["c131_b0"]), col(params["lpl_b0"]),  # [MA : MA+MB)
        col(params["c13_b1"]), col(params["c131_b1"]), col(params["c131_b2"]),
        col(params["c31_b1"]), col(params["lpl_scale"]), col(params["lpl_bias"]),
    ], axis=0)

    def whole(a):     # weights: whole array, constant index map -> fetched once
        return pl.BlockSpec(a.shape, lambda n: (0,) * a.ndim)

    kernel = functools.partial(_rbx2sr_kernel, W=W, Cin=Cin, Cout=Cout,
                               mid=mid, QvP=QvP, QK=QK)

    out = pl.pallas_call(
        kernel,
        out_shape=jax.ShapeDtypeStruct((N, Cout, QvP), jnp.float32),
        grid=(N,),
        in_specs=[pl.BlockSpec((1, Cin, QA), lambda n: (n, 0, 0)),
                  whole(w3_pack), whole(w1_pack), whole(bias_pack)],
        out_specs=pl.BlockSpec((1, Cout, QvP), lambda n: (n, 0, 0)),
        scratch_shapes=[pltpu.VMEM((MB, QA), jnp.float32)],
        compiler_params=pltpu.CompilerParams(
            dimension_semantics=("parallel",)),
    )(xp, w3_pack, w1_pack, bias_pack)

    # (N, Cout, QvP) -> drop lane slack -> (N, Cout, H, Wp) -> drop pad cols -> NCHW.
    return out[:, :, :Qv].reshape(N, Cout, H, Wp)[:, :, :, :W]


# ----------------------------------------------------------------------------
# Parameter init (deterministic, synthetic — shapes match the PyTorch __init__),
# stored HWIO; the wrapper repacks them into the kernel's matmul layouts.
# ----------------------------------------------------------------------------
def init_params(key, inp_planes, out_planes, depth_multiplier):
    mid = int(out_planes * depth_multiplier)
    ks = jax.random.split(key, 20)

    def w(k, shape, scale=0.1):
        return (jax.random.normal(k, shape, jnp.float32) * scale).astype(jnp.float32)

    p = {}
    p["w_3x3"] = w(ks[0], (3, 3, inp_planes, out_planes))
    p["b_3x3"] = w(ks[1], (out_planes,))
    p["c13_k0"] = w(ks[2], (1, 1, inp_planes, mid))
    p["c13_b0"] = w(ks[3], (mid,))
    p["c13_k1"] = w(ks[4], (3, 3, mid, out_planes))
    p["c13_b1"] = w(ks[5], (out_planes,))
    p["c131_k0"] = w(ks[6], (1, 1, inp_planes, mid))
    p["c131_b0"] = w(ks[7], (mid,))
    p["c131_k1"] = w(ks[8], (3, 3, mid, mid))
    p["c131_b1"] = w(ks[9], (mid,))
    p["c131_k2"] = w(ks[10], (1, 1, mid, out_planes))
    p["c131_b2"] = w(ks[11], (out_planes,))
    p["c31_k0"] = w(ks[12], (3, 3, inp_planes, mid))
    p["c31_b0"] = w(ks[13], (mid,))
    p["c31_k1"] = w(ks[14], (1, 1, mid, out_planes))
    p["c31_b1"] = w(ks[15], (out_planes,))
    p["lpl_k0"] = w(ks[16], (1, 1, inp_planes, out_planes))
    p["lpl_b0"] = w(ks[17], (out_planes,))
    p["lpl_scale"] = w(ks[18], (out_planes,), scale=0.001)
    p["lpl_bias"] = w(ks[19], (out_planes,), scale=0.001)
    return p


# ----------------------------------------------------------------------------
# Pure-JAX reference (faithful transcription of the PyTorch forward).
# ----------------------------------------------------------------------------
_LAPLACIAN_TAPS = jnp.array([0., 1., 0., 1., -4., 1., 0., 1., 0.], jnp.float32)


def _zpad(t):
    return jnp.pad(t, ((0, 0), (1, 1), (1, 1), (0, 0)))


def _bias_border_pad(t, b):
    tp = _zpad(t)
    bb = b.reshape(1, 1, 1, -1)
    tp = tp.at[:, 0:1, :, :].set(bb)
    tp = tp.at[:, -1:, :, :].set(bb)
    tp = tp.at[:, :, 0:1, :].set(bb)
    tp = tp.at[:, :, -1:, :].set(bb)
    return tp


def _conv_ref(xp, w, b):
    y = jax.lax.conv_general_dilated(
        xp, w, (1, 1), "VALID", dimension_numbers=("NHWC", "HWIO", "NHWC"))
    return y + b.reshape(1, 1, 1, -1)


def _dwconv_ref(xp, w9c, b):
    C = w9c.shape[1]
    w = w9c.reshape(3, 3, 1, C)
    y = jax.lax.conv_general_dilated(
        xp, w, (1, 1), "VALID", dimension_numbers=("NHWC", "HWIO", "NHWC"),
        feature_group_count=C)
    return y + b.reshape(1, 1, 1, -1)


def rbx2sr_ref(x_nchw, params):
    x = jnp.transpose(x_nchw, (0, 2, 3, 1)).astype(jnp.float32)
    y_a = _conv_ref(_zpad(x), params["w_3x3"], params["b_3x3"])
    t = _conv_ref(x, params["c13_k0"], params["c13_b0"])
    y_b = _conv_ref(_bias_border_pad(t, params["c13_b0"]),
                    params["c13_k1"], params["c13_b1"])
    t = _conv_ref(_zpad(x), params["c131_k0"], params["c131_b0"])
    t = _conv_ref(t, params["c131_k1"], params["c131_b1"])
    y_c = _conv_ref(t, params["c131_k2"], params["c131_b2"])
    t = _conv_ref(_zpad(x), params["c31_k0"], params["c31_b0"])
    y_d = _conv_ref(t, params["c31_k1"], params["c31_b1"])
    t = _conv_ref(x, params["lpl_k0"], params["lpl_b0"])
    w_dw = _LAPLACIAN_TAPS[:, None] * params["lpl_scale"][None, :]
    y_e = _dwconv_ref(_bias_border_pad(t, params["lpl_b0"]),
                      w_dw, params["lpl_bias"])
    y = y_a + y_b + y_c + y_d + y_e + x
    return jnp.transpose(y, (0, 3, 1, 2))


# ----------------------------------------------------------------------------
if __name__ == "__main__":
    # inp_planes == out_planes is required by the residual, as in the module.
    N, C_in, C_out, H, W = 2, 8, 8, 16, 16
    depth_multiplier = 2

    key = jax.random.PRNGKey(0)
    k_x, k_p = jax.random.split(key)
    params = init_params(k_p, C_in, C_out, depth_multiplier)
    x = jax.random.normal(k_x, (N, C_in, H, W), jnp.float32)  # NCHW like PyTorch

    y = rbx2sr_forward(x, params)
    y = jax.block_until_ready(y)
    assert y.shape == (N, C_out, H, W), y.shape

    y_ref = jax.block_until_ready(rbx2sr_ref(x, params))
    np.testing.assert_allclose(np.asarray(y), np.asarray(y_ref),
                               rtol=2e-4, atol=2e-4)
    print("KERNEL_OK")
</pallas_src>

<mosaic_0001>
module attributes {stable_mosaic.version = 11 : i64} {
  func.func @_rbx2sr_kernel(%arg0: i32, %arg1: memref<1x8x512xf32, #tpu.memory_space<vmem>>, %arg2: memref<144x48xf32, #tpu.memory_space<vmem>>, %arg3: memref<56x16xf32, #tpu.memory_space<vmem>>, %arg4: memref<120x1xf32, #tpu.memory_space<vmem>>, %arg5: memref<1x8x384xf32, #tpu.memory_space<vmem>>, %arg6: memref<40x512xf32, #tpu.memory_space<vmem>>) attributes {dimension_semantics = [#tpu.dimension_semantics<parallel>], iteration_bounds = array<i64: 2>, scalar_prefetch = 0 : i64, scratch_operands = 1 : i64, tpu.core_type = #tpu.core_type<tc>, window_params = [{transform_indices = @transform_0, window_bounds = array<i64: 1, 8, 512>}, {pipeline_mode = #tpu.pipeline_mode<synchronous>, transform_indices = @transform_1, window_bounds = array<i64: 144, 48>}, {pipeline_mode = #tpu.pipeline_mode<synchronous>, transform_indices = @transform_2, window_bounds = array<i64: 56, 16>}, {pipeline_mode = #tpu.pipeline_mode<synchronous>, transform_indices = @transform_3, window_bounds = array<i64: 120, 1>}, {transform_indices = @transform_4, window_bounds = array<i64: 1, 8, 384>}]} {
    %c0 = arith.constant 0 : index
    %c0_0 = arith.constant 0 : index
    %0 = vector.load %arg3[%c0, %c0_0] : memref<56x16xf32, #tpu.memory_space<vmem>>, vector<40x8xf32>
    %c0_1 = arith.constant 0 : index
    %c0_2 = arith.constant 0 : index
    %c0_3 = arith.constant 0 : index
    %1 = vector.load %arg1[%c0_1, %c0_2, %c0_3] : memref<1x8x512xf32, #tpu.memory_space<vmem>>, vector<1x8x512xf32>
    %2 = vector.shape_cast %1 : vector<1x8x512xf32> to vector<8x512xf32>
    %cst = arith.constant dense<0.000000e+00> : vector<40x512xf32>
    %3 = tpu.matmul %0, %2, %cst {dimension_numbers = #tpu.dot_dimension_numbers<[1], [0], [0], [1], [0, 0, 1, 1], [], []>} : vector<40x8xf32>, vector<8x512xf32>, vector<40x512xf32> -> vector<40x512xf32>
    %c24 = arith.constant 24 : index
    %c0_4 = arith.constant 0 : index
    %4 = vector.load %arg4[%c24, %c0_4] : memref<120x1xf32, #tpu.memory_space<vmem>>, vector<40x1xf32>
    %5 = vector.broadcast %4 : vector<40x1xf32> to vector<40x512xf32>
    %6 = arith.addf %3, %5 : vector<40x512xf32>
    %c0_5 = arith.constant 0 : index
    %c0_6 = arith.constant 0 : index
    %7 = vector.load %arg6[%c0_5, %c0_6] : memref<40x512xf32, #tpu.memory_space<vmem>>, vector<40x512xf32>
    tpu.vector_store %arg6[%c0_5, %c0_6], %6 {strides = array<i32>} : memref<40x512xf32, #tpu.memory_space<vmem>>, vector<40x512xf32>,
    %c0_7 = arith.constant 0 : index
    %c0_8 = arith.constant 0 : index
    %8 = vector.load %arg2[%c0_7, %c0_8] : memref<144x48xf32, #tpu.memory_space<vmem>>, vector<72x24xf32>
    %c0_9 = arith.constant 0 : index
    %c0_10 = arith.constant 0 : index
    %9 = vector.load %arg4[%c0_9, %c0_10] : memref<120x1xf32, #tpu.memory_space<vmem>>, vector<24x1xf32>
    %c0_11 = arith.constant 0 : index
    %c0_12 = arith.constant 0 : index
    %c0_13 = arith.constant 0 : index
    %10 = vector.load %arg1[%c0_11, %c0_12, %c0_13] : memref<1x8x512xf32, #tpu.memory_space<vmem>>, vector<1x8x420xf32>
    %11 = vector.shape_cast %10 : vector<1x8x420xf32> to vector<8x420xf32>
    %c0_14 = arith.constant 0 : index
    %c0_15 = arith.constant 0 : index
    %c1 = arith.constant 1 : index
    %12 = vector.load %arg1[%c0_14, %c0_15, %c1] : memref<1x8x512xf32, #tpu.memory_space<vmem>>, vector<1x8x420xf32>
    %13 = vector.shape_cast %12 : vector<1x8x420xf32> to vector<8x420xf32>
    %c0_16 = arith.constant 0 : index
    %c0_17 = arith.constant 0 : index
    %c2 = arith.constant 2 : index
    %14 = vector.load %arg1[%c0_16, %c0_17, %c2] : memref<1x8x512xf32, #tpu.memory_space<vmem>>, vector<1x8x420xf32>
    %15 = vector.shape_cast %14 : vector<1x8x420xf32> to vector<8x420xf32>
    %16 = tpu.concatenate %11, %13, %15 in 0 : vector<8x420xf32>, vector<8x420xf32>, vector<8x420xf32> -> vector<24x420xf32>
    %cst_18 = arith.constant dense<0.000000e+00> : vector<72x420xf32>
    %17 = tpu.matmul %8, %16, %cst_18 {dimension_numbers = #tpu.dot_dimension_numbers<[1], [0], [0], [1], [0, 0, 1, 1], [], []>} : vector<72x24xf32>, vector<24x420xf32>, vector<72x420xf32> -> vector<72x420xf32>
    %18 = vector.extract_strided_slice %17 {offsets = [0, 0], sizes = [24, 384], strides = [1, 1]} : vector<72x420xf32> to vector<24x384xf32>
    %19 = vector.extract_strided_slice %17 {offsets = [24, 18], sizes = [24, 384], strides = [1, 1]} : vector<72x420xf32> to vector<24x384xf32>
    %20 = arith.addf %18, %19 : vector<24x384xf32>
    %21 = vector.extract_strided_slice %17 {offsets = [48, 36], sizes = [24, 384], strides = [1, 1]} : vector<72x420xf32> to vector<24x384xf32>
    %22 = arith.addf %20, %21 : vector<24x384xf32>
    %23 = vector.broadcast %9 : vector<24x1xf32> to vector<24x384xf32>
    %24 = arith.addf %22, %23 : vector<24x384xf32>
    %25 = vector.extract_strided_slice %24 {offsets = [0, 0], sizes = [8, 384], strides = [1, 1]} : vector<24x384xf32> to vector<8x384xf32>
    %c0_19 = arith.constant 0 : index
    %c0_20 = arith.constant 0 : index
    %c19 = arith.constant 19 : index
    %26 = vector.load %arg1[%c0_19, %c0_20, %c19] : memref<1x8x512xf32, #tpu.memory_space<vmem>>, vector<1x8x384xf32>
    %27 = vector.shape_cast %26 : vector<1x8x384xf32> to vector<8x384xf32>
    %28 = arith.addf %25, %27 : vector<8x384xf32>
    %c40 = arith.constant 40 : index
    %c0_21 = arith.constant 0 : index
    %29 = vector.load %arg3[%c40, %c0_21] : memref<56x16xf32, #tpu.memory_space<vmem>>, vector<8x16xf32>
    %30 = vector.extract_strided_slice %24 {offsets = [8, 0], sizes = [16, 384], strides = [1, 1]} : vector<24x384xf32> to vector<16x384xf32>
    %cst_22 = arith.constant dense<0.000000e+00> : vector<8x384xf32>
    %31 = tpu.matmul %29, %30, %cst_22 {dimension_numbers = #tpu.dot_dimension_numbers<[1], [0], [0], [1], [0, 0, 1, 1], [], []>} : vector<8x16xf32>, vector<16x384xf32>, vector<8x384xf32> -> vector<8x384xf32>
    %c96 = arith.constant 96 : index
    %c0_23 = arith.constant 0 : index
    %32 = vector.load %arg4[%c96, %c0_23] : memref<120x1xf32, #tpu.memory_space<vmem>>, vector<8x1xf32>
    %33 = vector.broadcast %32 : vector<8x1xf32> to vector<8x384xf32>
    %34 = arith.addf %31, %33 : vector<8x384xf32>
    %35 = arith.addf %28, %34 : vector<8x384xf32>
    %c72 = arith.constant 72 : index
    %c0_24 = arith.constant 0 : index
    %36 = vector.load %arg2[%c72, %c0_24] : memref<144x48xf32, #tpu.memory_space<vmem>>, vector<24x48xf32>
    %c64 = arith.constant 64 : index
    %c0_25 = arith.constant 0 : index
    %37 = vector.load %arg4[%c64, %c0_25] : memref<120x1xf32, #tpu.memory_space<vmem>>, vector<8x1xf32>
    %c0_26 = arith.constant 0 : index
    %c0_27 = arith.constant 0 : index
    %38 = vector.load %arg6[%c0_26, %c0_27] : memref<40x512xf32, #tpu.memory_space<vmem>>, vector<16x420xf32>
    %c0_28 = arith.constant 0 : index
    %c1_29 = arith.constant 1 : index
    %39 = vector.load %arg6[%c0_28, %c1_29] : memref<40x512xf32, #tpu.memory_space<vmem>>, vector<16x420xf32>
    %c0_30 = arith.constant 0 : index
    %c2_31 = arith.constant 2 : index
    %40 = vector.load %arg6[%c0_30, %c2_31] : memref<40x512xf32, #tpu.memory_space<vmem>>, vector<16x420xf32>
    %41 = tpu.concatenate %38, %39, %40 in 0 : vector<16x420xf32>, vector<16x420xf32>, vector<16x420xf32> -> vector<48x420xf32>
    %cst_32 = arith.constant dense<0.000000e+00> : vector<24x420xf32>
    %42 = tpu.matmul %36, %41, %cst_32 {dimension_numbers = #tpu.dot_dimension_numbers<[1], [0], [0], [1], [0, 0, 1, 1], [], []>} : vector<24x48xf32>, vector<48x420xf32>, vector<24x420xf32> -> vector<24x420xf32>
    %43 = vector.extract_strided_slice %42 {offsets = [0, 0], sizes = [8, 384], strides = [1, 1]} : vector<24x420xf32> to vector<8x384xf32>
    %44 = vector.extract_strided_slice %42 {offsets = [8, 18], sizes = [8, 384], strides = [1, 1]} : vector<24x420xf32> to vector<8x384xf32>
    %45 = arith.addf %43, %44 : vector<8x384xf32>
    %46 = vector.extract_strided_slice %42 {offsets = [16, 36], sizes = [8, 384], strides = [1, 1]} : vector<24x420xf32> to vector<8x384xf32>
    %47 = arith.addf %45, %46 : vector<8x384xf32>
    %48 = vector.broadcast %37 : vector<8x1xf32> to vector<8x384xf32>
    %49 = arith.addf %47, %48 : vector<8x384xf32>
    %50 = arith.addf %35, %49 : vector<8x384xf32>
    %c96_33 = arith.constant 96 : index
    %c0_34 = arith.constant 0 : index
    %51 = vector.load %arg2[%c96_33, %c0_34] : memref<144x48xf32, #tpu.memory_space<vmem>>, vector<48x48xf32>
    %c72_35 = arith.constant 72 : index
    %c0_36 = arith.constant 0 : index
    %52 = vector.load %arg4[%c72_35, %c0_36] : memref<120x1xf32, #tpu.memory_space<vmem>>, vector<16x1xf32>
    %c16 = arith.constant 16 : index
    %c0_37 = arith.constant 0 : index
    %53 = vector.load %arg6[%c16, %c0_37] : memref<40x512xf32, #tpu.memory_space<vmem>>, vector<16x420xf32>
    %c16_38 = arith.constant 16 : index
    %c1_39 = arith.constant 1 : index
    %54 = vector.load %arg6[%c16_38, %c1_39] : memref<40x512xf32, #tpu.memory_space<vmem>>, vector<16x420xf32>
    %c16_40 = arith.constant 16 : index
    %c2_41 = arith.constant 2 : index
    %55 = vector.load %arg6[%c16_40, %c2_41] : memref<40x512xf32, #tpu.memory_space<vmem>>, vector<16x420xf32>
    %56 = tpu.concatenate %53, %54, %55 in 0 : vector<16x420xf32>, vector<16x420xf32>, vector<16x420xf32> -> vector<48x420xf32>
    %cst_42 = arith.constant dense<0.000000e+00> : vector<48x420xf32>
    %57 = tpu.matmul %51, %56, %cst_42 {dimension_numbers = #tpu.dot_dimension_numbers<[1], [0], [0], [1], [0, 0, 1, 1], [], []>} : vector<48x48xf32>, vector<48x420xf32>, vector<48x420xf32> -> vector<48x420xf32>
    %58 = vector.extract_strided_slice %57 {offsets = [0, 0], sizes = [16, 384], strides = [1, 1]} : vector<48x420xf32> to vector<16x384xf32>
    %59 = vector.extract_strided_slice %57 {offsets = [16, 18], sizes = [16, 384], strides = [1, 1]} : vector<48x420xf32> to vector<16x384xf32>
    %60 = arith.addf %58, %59 : vector<16x384xf32>
    %61 = vector.extract_strided_slice %57 {offsets = [32, 36], sizes = [16, 384], strides = [1, 1]} : vector<48x420xf32> to vector<16x384xf32>
    %62 = arith.addf %60, %61 : vector<16x384xf32>
    %63 = vector.broadcast %52 : vector<16x1xf32> to vector<16x384xf32>
    %64 = arith.addf %62, %63 : vector<16x384xf32>
    %c48 = arith.constant 48 : index
    %c0_43 = arith.constant 0 : index
    %65 = vector.load %arg3[%c48, %c0_43] : memref<56x16xf32, #tpu.memory_space<vmem>>, vector<8x16xf32>
    %cst_44 = arith.constant dense<0.000000e+00> : vector<8x384xf32>
    %66 = tpu.matmul %65, %64, %cst_44 {dimension_numbers = #tpu.dot_dimension_numbers<[1], [0], [0], [1], [0, 0, 1, 1], [], []>} : vector<8x16xf32>, vector<16x384xf32>, vector<8x384xf32> -> vector<8x384xf32>
    %c88 = arith.constant 88 : index
    %c0_45 = arith.constant 0 : index
    %67 = vector.load %arg4[%c88, %c0_45] : memref<120x1xf32, #tpu.memory_space<vmem>>, vector<8x1xf32>
    %68 = vector.broadcast %67 : vector<8x1xf32> to vector<8x384xf32>
    %69 = arith.addf %66, %68 : vector<8x384xf32>
    %70 = arith.addf %50, %69 : vector<8x384xf32>
    %c32 = arith.constant 32 : index
    %c1_46 = arith.constant 1 : index
    %71 = vector.load %arg6[%c32, %c1_46] : memref<40x512xf32, #tpu.memory_space<vmem>>, vector<8x384xf32>
    %c32_47 = arith.constant 32 : index
    %c18 = arith.constant 18 : index
    %72 = vector.load %arg6[%c32_47, %c18] : memref<40x512xf32, #tpu.memory_space<vmem>>, vector<8x384xf32>
    %73 = arith.addf %71, %72 : vector<8x384xf32>
    %c32_48 = arith.constant 32 : index
    %c20 = arith.constant 20 : index
    %74 = vector.load %arg6[%c32_48, %c20] : memref<40x512xf32, #tpu.memory_space<vmem>>, vector<8x384xf32>
    %75 = arith.addf %73, %74 : vector<8x384xf32>
    %c32_49 = arith.constant 32 : index
    %c37 = arith.constant 37 : index
    %76 = vector.load %arg6[%c32_49, %c37] : memref<40x512xf32, #tpu.memory_space<vmem>>, vector<8x384xf32>
    %77 = arith.addf %75, %76 : vector<8x384xf32>
    %c32_50 = arith.constant 32 : index
    %c19_51 = arith.constant 19 : index
    %78 = vector.load %arg6[%c32_50, %c19_51] : memref<40x512xf32, #tpu.memory_space<vmem>>, vector<8x384xf32>
    %cst_52 = arith.constant 4.000000e+00 : f32
    %79 = vector.broadcast %cst_52 : f32 to vector<8x384xf32>
    %80 = arith.mulf %79, %78 : vector<8x384xf32>
    %81 = arith.subf %77, %80 : vector<8x384xf32>
    %c104 = arith.constant 104 : index
    %c0_53 = arith.constant 0 : index
    %82 = vector.load %arg4[%c104, %c0_53] : memref<120x1xf32, #tpu.memory_space<vmem>>, vector<8x1xf32>
    %83 = vector.broadcast %82 : vector<8x1xf32> to vector<8x384xf32>
    %84 = arith.mulf %81, %83 : vector<8x384xf32>
    %85 = arith.addf %70, %84 : vector<8x384xf32>
    %c112 = arith.constant 112 : index
    %c0_54 = arith.constant 0 : index
    %86 = vector.load %arg4[%c112, %c0_54] : memref<120x1xf32, #tpu.memory_space<vmem>>, vector<8x1xf32>
    %87 = vector.broadcast %86 : vector<8x1xf32> to vector<8x384xf32>
    %88 = arith.addf %85, %87 : vector<8x384xf32>
    %c0_55 = arith.constant 0 : index
    %c0_56 = arith.constant 0 : index
    %c0_57 = arith.constant 0 : index
    %89 = vector.load %arg5[%c0_55, %c0_56, %c0_57] : memref<1x8x384xf32, #tpu.memory_space<vmem>>, vector<1x8x384xf32>
    %90 = vector.shape_cast %89 : vector<1x8x384xf32> to vector<8x384xf32>
    %91 = vector.shape_cast %88 : vector<8x384xf32> to vector<1x8x384xf32>
    tpu.vector_store %arg5[%c0_55, %c0_56, %c0_57], %91 {strides = array<i32>} : memref<1x8x384xf32, #tpu.memory_space<vmem>>, vector<1x8x384xf32>,
    return
  }
  func.func @transform_0(%arg0: i32) -> (i32, i32, i32) {
    %c0_i32 = arith.constant 0 : i32
    %c0_i32_0 = arith.constant 0 : i32
    %c0_i32_1 = arith.constant 0 : i32
    return %arg0, %c0_i32, %c0_i32_0 : i32, i32, i32
  }
  func.func @transform_1(%arg0: i32) -> (i32, i32) {
    %c0_i32 = arith.constant 0 : i32
    %c0_i32_0 = arith.constant 0 : i32
    %c0_i32_1 = arith.constant 0 : i32
    return %c0_i32, %c0_i32_0 : i32, i32
  }
  func.func @transform_2(%arg0: i32) -> (i32, i32) {
    %c0_i32 = arith.constant 0 : i32
    %c0_i32_0 = arith.constant 0 : i32
    %c0_i32_1 = arith.constant 0 : i32
    return %c0_i32, %c0_i32_0 : i32, i32
  }
  func.func @transform_3(%arg0: i32) -> (i32, i32) {
    %c0_i32 = arith.constant 0 : i32
    %c0_i32_0 = arith.constant 0 : i32
    %c0_i32_1 = arith.constant 0 : i32
    return %c0_i32, %c0_i32_0 : i32, i32
  }
  func.func @transform_4(%arg0: i32) -> (i32, i32, i32) {
    %c0_i32 = arith.constant 0 : i32
    %c0_i32_0 = arith.constant 0 : i32
    %c0_i32_1 = arith.constant 0 : i32
    return %arg0, %c0_i32, %c0_i32_0 : i32, i32, i32
  }
}

</mosaic_0001>

<llo_original>
// kernel: rbx2sr_forward.1
$region0: #{rbx2sr_forward.1}
  #allocation0 [shape = 'u32[]', space=smem, size = 0x4, offset = 0x4, fixed_abs, tag = 'smem constant byte address 0x4 - core index']
  #allocation1 [shape = 'u32[144,128]{1,0:T(1,128)}', space=vmem, size = 0x12000, scoped, tag = 'internal scratch']
  #allocation2 [shape = 'f32[40,512]{1,0:T(8,128)}', space=vmem, size = 0x14000, scoped, tag = 'scratch operand']
  %s0 = inlined_call_operand.vmem [shape: f32[2,8,512], index: 0, kind: input, shape index: {}]
  %s1 = inlined_call_operand.vmem [shape: f32[144,48], index: 1, kind: input, shape index: {}]
  %s2 = inlined_call_operand.vmem [shape: f32[56,16], index: 2, kind: input, shape index: {}]
  %s3 = inlined_call_operand.vmem [shape: f32[120,1], index: 3, kind: input, shape index: {}]
  %s4 = inlined_call_operand.vmem [shape: f32[2,8,384], index: 4, kind: output, shape index: {}]
  %s5 = sld [smem:[#allocation0]]
  $region49: #{rbx2sr_forward.1} parent=0
    _
  %s7 = ssub.s32 1, %s5
  %s8 = scalar_select 0, %s7, %s5
  loop: start=0, step=1, limit=4
  $region2: #{rbx2sr_forward.1} parent=0 // loop_pre_header
    _
  $region3: #{rbx2sr_forward.1} parent=0 // loop_header
    %s10 = sphi 0, %s14
    %p11 = scmp.ge.s32.totalorder %s10, 4
    %s20 = sphi 0, %s22
    %s23 = sphi 0, %s20
    %s24 = sphi 0, %s23
    %s40 = sphi 0, %s24
    %s44 = sphi 0, %s44
    %s46 = sphi 0, %s44
    %s47 = sphi 0, %s46
    %s61 = sphi 0, %s47
    %s65 = sphi 0, %s65
    %s67 = sphi 0, %s65
    %s68 = sphi 0, %s67
    %s82 = sphi 0, %s68
    %s86 = sphi 0, %s86
    %s88 = sphi 0, %s86
    %s89 = sphi 0, %s88
    %s103 = sphi 0, %s89
    %s109 = sphi 0, %s111
    %s112 = sphi 0, %s109
    %s113 = sphi 0, %s112
    %s129 = sphi 0, %s113
  $region4: #{rbx2sr_forward.1} parent=0 // loop_header_branch
    %13 = sbr.rel (%p11) target = $region8
  $region5: #{rbx2sr_forward.1} parent=0 // loop_body
    %s15 = ssub.s32 %s10, 1
    %s16 = ssub.s32 %s10, 2
    %s17 = sadd.s32 %s10, 1
    %s18 = ssub.s32 %s10, %s17
    %p19 = scmp.eq.s32.totalorder %s18, 0
    %s21 = sadd.s32 %s20, 1
    %s22 = scalar_select %p19, %s20, %s21
    %p25 = pneg %p19
    %p26 = scmp.eq.s32.totalorder %s10, 1
    %p27 = por %p25, %p26
    %p28 = scmp.ne.s32.totalorder %s20, %s23
    %p29 = scmp.eq.s32.totalorder %s10, 0
    %p30 = por %p28, %p29
    %p31 = scmp.ne.s32.totalorder %s20, %s23
    %p32 = scmp.eq.s32.totalorder %s15, 1
    %p33 = por %p31, %p32
    %p34 = scmp.ne.s32.totalorder %s23, %s24
    %p35 = scmp.eq.s32.totalorder %s15, 0
    %p36 = por %p34, %p35
    %p37 = scmp.ne.s32.totalorder %s23, %s24
    %p38 = scmp.eq.s32.totalorder %s16, 1
    %p39 = por %p37, %p38
    %p41 = scmp.ne.s32.totalorder %s24, %s40
    %p42 = scmp.eq.s32.totalorder %s16, 0
    %p43 = por %p41, %p42
    %s45 = sadd.s32 %s44, 1
    %p48 = scmp.eq.s32.totalorder %s10, 1
    %p49 = scmp.ne.s32.totalorder %s44, %s46
    %p50 = scmp.eq.s32.totalorder %s10, 0
    %p51 = por %p49, %p50
    %p52 = scmp.ne.s32.totalorder %s44, %s46
    %p53 = scmp.eq.s32.totalorder %s15, 1
    %p54 = por %p52, %p53
    %p55 = scmp.ne.s32.totalorder %s46, %s47
    %p56 = scmp.eq.s32.totalorder %s15, 0
    %p57 = por %p55, %p56
    %p58 = scmp.ne.s32.totalorder %s46, %s47
    %p59 = scmp.eq.s32.totalorder %s16, 1
    %p60 = por %p58, %p59
    %p62 = scmp.ne.s32.totalorder %s47, %s61
    %p63 = scmp.eq.s32.totalorder %s16, 0
    %p64 = por %p62, %p63
    %s66 = sadd.s32 %s65, 1
    %p69 = scmp.eq.s32.totalorder %s10, 1
    %p70 = scmp.ne.s32.totalorder %s65, %s67
    %p71 = scmp.eq.s32.totalorder %s10, 0
    %p72 = por %p70, %p71
    %p73 = scmp.ne.s32.totalorder %s65, %s67
    %p74 = scmp.eq.s32.totalorder %s15, 1
    %p75 = por %p73, %p74
    %p76 = scmp.ne.s32.totalorder %s67, %s68
    %p77 = scmp.eq.s32.totalorder %s15, 0
    %p78 = por %p76, %p77
    %p79 = scmp.ne.s32.totalorder %s67, %s68
    %p80 = scmp.eq.s32.totalorder %s16, 1
    %p81 = por %p79, %p80
    %p83 = scmp.ne.s32.totalorder %s68, %s82
    %p84 = scmp.eq.s32.totalorder %s16, 0
    %p85 = por %p83, %p84
    %s87 = sadd.s32 %s86, 1
    %p90 = scmp.eq.s32.totalorder %s10, 1
    %p91 = scmp.ne.s32.totalorder %s86, %s88
    %p92 = scmp.eq.s32.totalorder %s10, 0
    %p93 = por %p91, %p92
    %p94 = scmp.ne.s32.totalorder %s86, %s88
    %p95 = scmp.eq.s32.totalorder %s15, 1
    %p96 = por %p94, %p95
    %p97 = scmp.ne.s32.totalorder %s88, %s89
    %p98 = scmp.eq.s32.totalorder %s15, 0
    %p99 = por %p97, %p98
    %p100 = scmp.ne.s32.totalorder %s88, %s89
    %p101 = scmp.eq.s32.totalorder %s16, 1
    %p102 = por %p100, %p101
    %p104 = scmp.ne.s32.totalorder %s89, %s103
    %p105 = scmp.eq.s32.totalorder %s16, 0
    %p106 = por %p104, %p105
    %s107 = ssub.s32 %s10, %s17
    %p108 = scmp.eq.s32.totalorder %s107, 0
    %s110 = sadd.s32 %s109, 1
    %s111 = scalar_select %p108, %s109, %s110
    %p114 = pneg %p108
    %p115 = scmp.eq.s32.totalorder %s10, 1
    %p116 = por %p114, %p115
    %p117 = scmp.ne.s32.totalorder %s109, %s112
    %p118 = scmp.eq.s32.totalorder %s10, 0
    %p119 = por %p117, %p118
    %p120 = scmp.ne.s32.totalorder %s109, %s112
    %p121 = scmp.eq.s32.totalorder %s15, 1
    %p122 = por %p120, %p121
    %p123 = scmp.ne.s32.totalorder %s112, %s113
    %p124 = scmp.eq.s32.totalorder %s15, 0
    %p125 = por %p123, %p124
    %p126 = scmp.ne.s32.totalorder %s112, %s113
    %p127 = scmp.eq.s32.totalorder %s16, 1
    %p128 = por %p126, %p127
    %p130 = scmp.ne.s32.totalorder %s113, %s129
    %p131 = scmp.eq.s32.totalorder %s16, 0
    %p132 = por %p130, %p131
    %p133 = scmp.le.s32.totalorder 1, %s10
    %p134 = scmp.lt.s32.totalorder %s10, 3
    %p135 = pnand %p133, %p134
    %p136 = pneg %p135
    // Predicated region
    $region9: #{rbx2sr_forward.1} parent=5 // pred_check
      _
    $region10: #{rbx2sr_forward.1} parent=5 // pred_check_branch
      %138 = sbr.rel (%p135) target = $region12
    $region11: #{rbx2sr_forward.1} parent=5 // pred_region
      %s139 = ssub.s32 %s10, 1
      // Predicated region
      $region13: #{rbx2sr_forward.1} parent=11 // pred_check
        %p140 = pneg %p57
      $region14: #{rbx2sr_forward.1} parent=11 // pred_check_branch
        %142 = sbr.rel (%p140) target = $region16
      $region15: #{rbx2sr_forward.1} parent=11 // pred_region
        _
      $region16: #{rbx2sr_forward.1} parent=11 // pred_fallthru
        _
      // Predicated region
      $region17: #{rbx2sr_forward.1} parent=11 // pred_check
        %p143 = pneg %p78
      $region18: #{rbx2sr_forward.1} parent=11 // pred_check_branch
        %145 = sbr.rel (%p143) target = $region20
      $region19: #{rbx2sr_forward.1} parent=11 // pred_region
        _
      $region20: #{rbx2sr_forward.1} parent=11 // pred_fallthru
        _
      // Predicated region
      $region21: #{rbx2sr_forward.1} parent=11 // pred_check
        %p146 = pneg %p99
      $region22: #{rbx2sr_forward.1} parent=11 // pred_check_branch
        %148 = sbr.rel (%p146) target = $region24
      $region23: #{rbx2sr_forward.1} parent=11 // pred_region
        _
      $region24: #{rbx2sr_forward.1} parent=11 // pred_fallthru
        _
    $region12: #{rbx2sr_forward.1} parent=5 // pred_fallthru
      _
    %p149 = scmp.lt.s32.totalorder %s10, 2
    // Predicated region
    $region25: #{rbx2sr_forward.1} parent=5 // pred_check
      %p150 = pneg %p149
    $region26: #{rbx2sr_forward.1} parent=5 // pred_check_branch
      %152 = sbr.rel (%p150) target = $region28
    $region27: #{rbx2sr_forward.1} parent=5 // pred_region
      // Predicated region
      $region29: #{rbx2sr_forward.1} parent=27 // pred_check
        %p153 = pneg %p30
      $region30: #{rbx2sr_forward.1} parent=27 // pred_check_branch
        %155 = sbr.rel (%p153) target = $region32
      $region31: #{rbx2sr_forward.1} parent=27 // pred_region
        %p156 = scmp.lt.s32.totalorder %s10, 1
        %s157 = scalar_select %p156, %s10, 1
        %s158 = smul.addr %s157, 4
        %s159 = smul.addr %s158, 8
        %s160 = scalar_lea.vmem %s0, %s159
      $region32: #{rbx2sr_forward.1} parent=27 // pred_fallthru
        _
    $region28: #{rbx2sr_forward.1} parent=5 // pred_fallthru
      _
    %p161 = scmp.le.s32.totalorder 1, %s10
    %p162 = scmp.lt.s32.totalorder %s10, 3
    %p163 = pnand %p161, %p162
    %p164 = pneg %p163
    // Predicated region
    $region33: #{rbx2sr_forward.1} parent=5 // pred_check
      _
    $region34: #{rbx2sr_forward.1} parent=5 // pred_check_branch
      %166 = sbr.rel (%p163) target = $region36
    $region35: #{rbx2sr_forward.1} parent=5 // pred_region
      %s167 = ssub.s32 %s10, 1
      %p168 = scmp.lt.s32.totalorder %s15, 1
      %s169 = scalar_select %p168, %s15, 1
      %s170 = smul.addr %s169, 4
      %s171 = smul.addr %s170, 8
      %s172 = scalar_lea.vmem %s0, %s171
      %p173 = pneg %p36
      %p174 = pneg %p33
      %p175 = pneg %p57
      %p176 = pneg %p54
      %p177 = pneg %p78
      %p178 = pneg %p75
      %p179 = pneg %p99
      %p180 = pneg %p96
      %p181 = pneg %p125
      %p182 = pneg %p122
      %p183 = scmp.lt.s32.totalorder %s15, 1
      %s184 = scalar_select %p183, %s15, 1
      %s185 = smul.addr %s184, 3
      %s186 = smul.addr %s185, 8
      %s187 = scalar_lea.vmem %s4, %s186
      %p188 = scmp.lt.s32.totalorder %s15, 1
      %s189 = scalar_select %p188, %s15, 1
      %s190 = smul.addr %s189, 4
      %s191 = smul.addr %s190, 8
      %s192 = scalar_lea.vmem %s0, %s191
      %p193 = scmp.lt.s32.totalorder %s15, 1
      %s194 = scalar_select %p193, %s15, 1
      %s195 = smul.addr %s194, 3
      %s196 = smul.addr %s195, 8
      %s197 = scalar_lea.vmem %s4, %s196
      %v198 = vld [vmem:[%s2] sm:$0xff]
      %v199 = vld [vmem:[%s2 + $0x8] sm:$0xff]
      %v200 = vld [vmem:[%s2 + $0x10] sm:$0xff]
      %v201 = vld [vmem:[%s2 + $0x18] sm:$0xff]
      %v202 = vld [vmem:[%s2 + $0x20] sm:$0xff]
      %v203 = vld [vmem:[%s192] sm:$0xff]
      %v204 = vld [vmem:[%s192 + $0x8] sm:$0xff]
      %v205 = vld [vmem:[%s192 + $0x10] sm:$0xff]
      %v206 = vld [vmem:[%s192 + $0x18] sm:$0xff]
      %v207 = vld [vmem:[%s3 + $0x18] sm:$0xff]
      %v208 = vld [vmem:[%s3 + $0x20] sm:$0xff]
      %v209 = vld [vmem:[%s3 + $0x28] sm:$0xff]
      %v210 = vld [vmem:[%s3 + $0x30] sm:$0xff]
      %v211 = vld [vmem:[%s3 + $0x38] sm:$0xff]
      %213 = vset.pattern.permute.xlu0 0
      %214 = vperm.xlu0 %213, %v207
      %v215 = vpop.permute.xlu0 %214
      %218 = vset.pattern.permute.xlu0 0
      %219 = vperm.xlu0 %218, %v208
      %v220 = vpop.permute.xlu0 %219
      %223 = vset.pattern.permute.xlu0 0
      %224 = vperm.xlu0 %223, %v209
      %v225 = vpop.permute.xlu0 %224
      %228 = vset.pattern.permute.xlu0 0
      %229 = vperm.xlu0 %228, %v210
      %v230 = vpop.permute.xlu0 %229
      %233 = vset.pattern.permute.xlu0 0
      %234 = vperm.xlu0 %233, %v211
      %v235 = vpop.permute.xlu0 %234
      %vm237 = vcmask 64512
      %v239 = vsel %vm237, %v198, 0
      %v242 = vsel %vm237, %v199, 0
      %v245 = vsel %vm237, %v200, 0
      %v248 = vsel %vm237, %v201, 0
      %v251 = vsel %vm237, %v202, 0
      %253 = vmatprep.subr.mxu0 %v204
      %254 = vmatpush1.msra.mxu0 %v203
      %255 = vmatprep.subr.mxu0 0.0
      %256 = vmatpush1.msra.mxu0 0.0
      %257 = vmatprep.subr.mxu0 0.0
      %258 = vmatpush1.msra.mxu0 0.0
      %259 = vmatprep.subr.mxu0 0.0
      %260 = vmatpush1.msra.mxu0 0.0
      %261 = vmatprep.subr.mxu0 0.0
      %262 = vmatpush1.msra.mxu0 0.0
      %263 = vmatprep.subr.mxu0 0.0
      %264 = vmatpush1.msra.mxu0 0.0
      %265 = vmatprep.subr.mxu0 0.0
      %266 = vmatpush1.msra.mxu0 0.0
      %267 = vmatprep.subr.mxu0 0.0
      %268 = vmatpush1.msra.mxu0 0.0
      %269 = vmatprep.subr.mxu0 0.0
      %270 = vmatpush1.msra.mxu0 0.0
      %271 = vmatprep.subr.mxu0 0.0
      %272 = vmatpush1.msra.mxu0 0.0
      %273 = vmatprep.subr.mxu0 0.0
      %274 = vmatpush1.msra.mxu0 0.0
      %275 = vmatprep.subr.mxu0 0.0
      %276 = vmatpush1.msra.mxu0 0.0
      %277 = vmatprep.subr.mxu0 0.0
      %278 = vmatpush1.msra.mxu0 0.0
      %279 = vmatprep.subr.mxu0 0.0
      %280 = vmatpush1.msra.mxu0 0.0
      %281 = vmatprep.subr.mxu0 0.0
      %282 = vmatpush1.msra.mxu0 0.0
      %283 = vmatprep.subr.mxu0 0.0
      %284 = vmatpush1.msra.mxu0 0.0
      %285 = vmatprep.subr.mxu0 0.0
      %286 = vmatpush1.msra.mxu0 0.0
      %287 = vmatprep.subr.mxu0 0.0
      %288 = vmatpush1.msra.mxu0 0.0
      %289 = vmatprep.subr.mxu0 0.0
      %290 = vmatpush1.msra.mxu0 0.0
      %291 = vmatprep.subr.mxu0 0.0
      %292 = vmatpush1.msra.mxu0 0.0
      %293 = vmatprep.subr.mxu0 0.0
      %294 = vmatpush1.msra.mxu0 0.0
      %295 = vmatprep.subr.mxu0 0.0
      %296 = vmatpush1.msra.mxu0 0.0
      %297 = vmatprep.subr.mxu0 0.0
      %298 = vmatpush1.msra.mxu0 0.0
      %299 = vmatprep.subr.mxu0 0.0
      %300 = vmatpush1.msra.mxu0 0.0
      %301 = vmatprep.subr.mxu0 0.0
      %302 = vmatpush1.msra.mxu0 0.0
      %303 = vmatprep.subr.mxu0 0.0
      %304 = vmatpush1.msra.mxu0 0.0
      %305 = vmatprep.subr.mxu0 0.0
      %306 = vmatpush1.msra.mxu0 0.0
      %307 = vmatprep.subr.mxu0 0.0
      %308 = vmatpush1.msra.mxu0 0.0
      %309 = vmatprep.subr.mxu0 0.0
      %310 = vmatpush1.msra.mxu0 0.0
      %311 = vmatprep.subr.mxu0 0.0
      %312 = vmatpush1.msra.mxu0 0.0
      %313 = vmatprep.subr.mxu0 0.0
      %314 = vmatpush1.msra.mxu0 0.0
      %315 = vmatprep.subr.mxu0 0.0
      %316 = vmatpush1.msra.mxu0 0.0
      %317 = vmatprep.mubr.f32.mxu0 0.0
      %318 = vmatmul.mubr.f32.gmra.mrb[0].mxu0 %v239
      %v319 = vpop.f32.mrb[0].mxu0
      %v320 = vadd.f32 %v215, %v319
      %v321 = vpop.f32.mrb[0].mxu0
      %v322 = vadd.f32 %v215, %v321
      %323 = vmatprep.mubr.f32.mxu0 0.0
      %324 = vmatmul.mubr.f32.gmra.mrb[0].mxu0 %v242
      %v325 = vpop.f32.mrb[0].mxu0
      %v326 = vadd.f32 %v220, %v325
      %v327 = vpop.f32.mrb[0].mxu0
      %v328 = vadd.f32 %v220, %v327
      %329 = vmatprep.mubr.f32.mxu0 0.0
      %330 = vmatmul.mubr.f32.gmra.mrb[0].mxu0 %v245
      %v331 = vpop.f32.mrb[0].mxu0
      %v332 = vadd.f32 %v225, %v331
      %v333 = vpop.f32.mrb[0].mxu0
      %v334 = vadd.f32 %v225, %v333
      %335 = vmatprep.mubr.f32.mxu0 0.0
      %336 = vmatmul.mubr.f32.gmra.mrb[0].mxu0 %v248
      %v337 = vpop.f32.mrb[0].mxu0
      %v338 = vadd.f32 %v230, %v337
      %v339 = vpop.f32.mrb[0].mxu0
      %v340 = vadd.f32 %v230, %v339
      %341 = vmatprep.mubr.f32.mxu0 0.0
      %342 = vmatmul.mubr.f32.gmra.mrb[0].mxu0 %v251
      %v343 = vpop.f32.mrb[0].mxu0
      %v344 = vadd.f32 %v235, %v343
      %v345 = vpop.f32.mrb[0].mxu0
      %v346 = vadd.f32 %v235, %v345
      %347 = vdwg.mxu0
      %348 = vmatprep.subr.mxu0 %v206
      %349 = vmatpush1.msra.mxu0 %v205
      %350 = vmatprep.subr.mxu0 0.0
      %351 = vmatpush1.msra.mxu0 0.0
      %352 = vmatprep.subr.mxu0 0.0
      %353 = vmatpush1.msra.mxu0 0.0
      %354 = vmatprep.subr.mxu0 0.0
      %355 = vmatpush1.msra.mxu0 0.0
      %356 = vmatprep.subr.mxu0 0.0
      %357 = vmatpush1.msra.mxu0 0.0
      %358 = vmatprep.subr.mxu0 0.0
      %359 = vmatpush1.msra.mxu0 0.0
      %360 = vmatprep.subr.mxu0 0.0
      %361 = vmatpush1.msra.mxu0 0.0
      %362 = vmatprep.subr.mxu0 0.0
      %363 = vmatpush1.msra.mxu0 0.0
      %364 = vmatprep.subr.mxu0 0.0
      %365 = vmatpush1.msra.mxu0 0.0
      %366 = vmatprep.subr.mxu0 0.0
      %367 = vmatpush1.msra.mxu0 0.0
      %368 = vmatprep.subr.mxu0 0.0
      %369 = vmatpush1.msra.mxu0 0.0
      %370 = vmatprep.subr.mxu0 0.0
      %371 = vmatpush1.msra.mxu0 0.0
      %372 = vmatprep.subr.mxu0 0.0
      %373 = vmatpush1.msra.mxu0 0.0
      %374 = vmatprep.subr.mxu0 0.0
      %375 = vmatpush1.msra.mxu0 0.0
      %376 = vmatprep.subr.mxu0 0.0
      %377 = vmatpush1.msra.mxu0 0.0
      %378 = vmatprep.subr.mxu0 0.0
      %379 = vmatpush1.msra.mxu0 0.0
      %380 = vmatprep.subr.mxu0 0.0
      %381 = vmatpush1.msra.mxu0 0.0
      %382 = vmatprep.subr.mxu0 0.0
      %383 = vmatpush1.msra.mxu0 0.0
      %384 = vmatprep.subr.mxu0 0.0
      %385 = vmatpush1.msra.mxu0 0.0
      %386 = vmatprep.subr.mxu0 0.0
      %387 = vmatpush1.msra.mxu0 0.0
      %388 = vmatprep.subr.mxu0 0.0
      %389 = vmatpush1.msra.mxu0 0.0
      %390 = vmatprep.subr.mxu0 0.0
      %391 = vmatpush1.msra.mxu0 0.0
      %392 = vmatprep.subr.mxu0 0.0
      %393 = vmatpush1.msra.mxu0 0.0
      %394 = vmatprep.subr.mxu0 0.0
      %395 = vmatpush1.msra.mxu0 0.0
      %396 = vmatprep.subr.mxu0 0.0
      %397 = vmatpush1.msra.mxu0 0.0
      %398 = vmatprep.subr.mxu0 0.0
      %399 = vmatpush1.msra.mxu0 0.0
      %400 = vmatprep.subr.mxu0 0.0
      %401 = vmatpush1.msra.mxu0 0.0
      %402 = vmatprep.subr.mxu0 0.0
      %403 = vmatpush1.msra.mxu0 0.0
      %404 = vmatprep.subr.mxu0 0.0
      %405 = vmatpush1.msra.mxu0 0.0
      %406 = vmatprep.subr.mxu0 0.0
      %407 = vmatpush1.msra.mxu0 0.0
      %408 = vmatprep.subr.mxu0 0.0
      %409 = vmatpush1.msra.mxu0 0.0
      %410 = vmatprep.subr.mxu0 0.0
      %411 = vmatpush1.msra.mxu0 0.0
      %412 = vmatprep.mubr.f32.mxu0 0.0
      %413 = vmatmul.mubr.f32.gmra.mrb[0].mxu0 %v239
      %v414 = vpop.f32.mrb[0].mxu0
      %v415 = vadd.f32 %v215, %v414
      %v416 = vpop.f32.mrb[0].mxu0
      %v417 = vadd.f32 %v215, %v416
      %418 = vmatprep.mubr.f32.mxu0 0.0
      %419 = vmatmul.mubr.f32.gmra.mrb[0].mxu0 %v242
      %v420 = vpop.f32.mrb[0].mxu0
      %v421 = vadd.f32 %v220, %v420
      %v422 = vpop.f32.mrb[0].mxu0
      %v423 = vadd.f32 %v220, %v422
      %424 = vmatprep.mubr.f32.mxu0 0.0
      %425 = vmatmul.mubr.f32.gmra.mrb[0].mxu0 %v245
      %v426 = vpop.f32.mrb[0].mxu0
      %v427 = vadd.f32 %v225, %v426
      %v428 = vpop.f32.mrb[0].mxu0
      %v429 = vadd.f32 %v225, %v428
      %430 = vmatprep.mubr.f32.mxu0 0.0
      %431 = vmatmul.mubr.f32.gmra.mrb[0].mxu0 %v248
      %v432 = vpop.f32.mrb[0].mxu0
      %v433 = vadd.f32 %v230, %v432
      %v434 = vpop.f32.mrb[0].mxu0
      %v435 = vadd.f32 %v230, %v434
      %436 = vmatprep.mubr.f32.mxu0 0.0
      %437 = vmatmul.mubr.f32.gmra.mrb[0].mxu0 %v251
      %v438 = vpop.f32.mrb[0].mxu0
      %v439 = vadd.f32 %v235, %v438
      %v440 = vpop.f32.mrb[0].mxu0
      %v441 = vadd.f32 %v235, %v440
      %442 = vdwg.mxu0
      %443 = vst [vmem:[#allocation2] sm:$0xff] %v320
      %444 = vst [vmem:[#allocation2 + $0x8] sm:$0xff] %v322
      %445 = vst [vmem:[#allocation2 + $0x10] sm:$0xff] %v415
      %446 = vst [vmem:[#allocation2 + $0x18] sm:$0xff] %v417
      %447 = vst [vmem:[#allocation2 + $0x20] sm:$0xff] %v326
      %448 = vst [vmem:[#allocation2 + $0x28] sm:$0xff] %v328
      %449 = vst [vmem:[#allocation2 + $0x30] sm:$0xff] %v421
      %450 = vst [vmem:[#allocation2 + $0x38] sm:$0xff] %v423
      %451 = vst [vmem:[#allocation2 + $0x40] sm:$0xff] %v332
      %452 = vst [vmem:[#allocation2 + $0x48] sm:$0xff] %v334
      %453 = vst [vmem:[#allocation2 + $0x50] sm:$0xff] %v427
      %454 = vst [vmem:[#allocation2 + $0x58] sm:$0xff] %v429
      %455 = vst [vmem:[#allocation2 + $0x60] sm:$0xff] %v338
      %456 = vst [vmem:[#allocation2 + $0x68] sm:$0xff] %v340
      %457 = vst [vmem:[#allocation2 + $0x70] sm:$0xff] %v433
      %458 = vst [vmem:[#allocation2 + $0x78] sm:$0xff] %v435
      %459 = vst [vmem:[#allocation2 + $0x80] sm:$0xff] %v344
      %460 = vst [vmem:[#allocation2 + $0x88] sm:$0xff] %v346
      %461 = vst [vmem:[#allocation2 + $0x90] sm:$0xff] %v439
      %462 = vst [vmem:[#allocation2 + $0x98] sm:$0xff] %v441
      %v463 = vld [vmem:[%s1] sm:$0xff]
      %v464 = vld [vmem:[%s1 + $0x8] sm:$0xff]
      %v465 = vld [vmem:[%s1 + $0x10] sm:$0xff]
      %v466 = vld [vmem:[%s1 + $0x18] sm:$0xff]
      %v467 = vld [vmem:[%s1 + $0x20] sm:$0xff]
      %v468 = vld [vmem:[%s1 + $0x28] sm:$0xff]
      %v469 = vld [vmem:[%s1 + $0x30] sm:$0xff]
      %v470 = vld [vmem:[%s1 + $0x38] sm:$0xff]
      %v471 = vld [vmem:[%s1 + $0x40] sm:$0xff]
      %v472 = vld [vmem:[%s3] sm:$0xff]
      %v473 = vld [vmem:[%s3 + $0x8] sm:$0xff]
      %v474 = vld [vmem:[%s3 + $0x10] sm:$0xff]
      %v475 = vld [vmem:[%s192] sm:$0xff]
      %v476 = vld [vmem:[%s192 + $0x8] sm:$0xff]
      %v477 = vld [vmem:[%s192 + $0x10] sm:$0xff]
      %v478 = vld [vmem:[%s192 + $0x18] sm:$0xff]
      %483 = vrot.lane.b32.xlu0 %v475, 127
      %v484 = vpop.permute.xlu0 %483
      %485 = vrot.lane.b32.xlu0 %v476, 127
      %v486 = vpop.permute.xlu0 %485
      %487 = vrot.lane.b32.xlu0 %v477, 127
      %v488 = vpop.permute.xlu0 %487
      %489 = vrot.lane.b32.xlu0 %v478, 127
      %v490 = vpop.permute.xlu0 %489
      %vm491 = vcmask 1039360
      %v492 = vsel %vm491, %v484, %v486
      %v493 = vsel %vm491, %v486, %v488
      %v494 = vsel %vm491, %v488, %v490
      %499 = vrot.lane.b32.xlu0 %v475, 126
      %v500 = vpop.permute.xlu0 %499
      %501 = vrot.lane.b32.xlu0 %v476, 126
      %v502 = vpop.permute.xlu0 %501
      %503 = vrot.lane.b32.xlu0 %v477, 126
      %v504 = vpop.permute.xlu0 %503
      %505 = vrot.lane.b32.xlu0 %v478, 126
      %v506 = vpop.permute.xlu0 %505
      %vm507 = vcmask 1031168
      %v508 = vsel %vm507, %v500, %v502
      %v509 = vsel %vm507, %v502, %v504
      %v510 = vsel %vm507, %v504, %v506
      %vm515 = vcmask 195584
      %v517 = vsel %vm515, %v463, 0
      %v520 = vsel %vm515, %v464, 0
      %v523 = vsel %vm515, %v465, 0
      %v526 = vsel %vm515, %v466, 0
      %v529 = vsel %vm515, %v467, 0
      %v532 = vsel %vm515, %v468, 0
      %v535 = vsel %vm515, %v469, 0
      %v538 = vsel %vm515, %v470, 0
      %v541 = vsel %vm515, %v471, 0
      %543 = vmatprep.subr.mxu0 %v476
      %544 = vmatpush1.msra.mxu0 %v475
      %545 = vmatprep.subr.mxu0 %v493
      %546 = vmatpush1.msra.mxu0 %v492
      %547 = vmatprep.subr.mxu0 %v509
      %548 = vmatpush1.msra.mxu0 %v508
      %549 = vmatprep.subr.mxu0 0.0
      %550 = vmatpush1.msra.mxu0 0.0
      %551 = vmatprep.subr.mxu0 0.0
      %552 = vmatpush1.msra.mxu0 0.0
      %553 = vmatprep.subr.mxu0 0.0
      %554 = vmatpush1.msra.mxu0 0.0
      %555 = vmatprep.subr.mxu0 0.0
      %556 = vmatpush1.msra.mxu0 0.0
      %557 = vmatprep.subr.mxu0 0.0
      %558 = vmatpush1.msra.mxu0 0.0
      %559 = vmatprep.subr.mxu0 0.0
      %560 = vmatpush1.msra.mxu0 0.0
      %561 = vmatprep.subr.mxu0 0.0
      %562 = vmatpush1.msra.mxu0 0.0
      %563 = vmatprep.subr.mxu0 0.0
      %564 = vmatpush1.msra.mxu0 0.0
      %565 = vmatprep.subr.mxu0 0.0
      %566 = vmatpush1.msra.mxu0 0.0
      %567 = vmatprep.subr.mxu0 0.0
      %568 = vmatpush1.msra.mxu0 0.0
      %569 = vmatprep.subr.mxu0 0.0
      %570 = vmatpush1.msra.mxu0 0.0
      %571 = vmatprep.subr.mxu0 0.0
      %572 = vmatpush1.msra.mxu0 0.0
      %573 = vmatprep.subr.mxu0 0.0
      %574 = vmatpush1.msra.mxu0 0.0
      %575 = vmatprep.subr.mxu0 0.0
      %576 = vmatpush1.msra.mxu0 0.0
      %577 = vmatprep.subr.mxu0 0.0
      %578 = vmatpush1.msra.mxu0 0.0
      %579 = vmatprep.subr.mxu0 0.0
      %580 = vmatpush1.msra.mxu0 0.0
      %581 = vmatprep.subr.mxu0 0.0
      %582 = vmatpush1.msra.mxu0 0.0
      %583 = vmatprep.subr.mxu0 0.0
      %584 = vmatpush1.msra.mxu0 0.0
      %585 = vmatprep.subr.mxu0 0.0
      %586 = vmatpush1.msra.mxu0 0.0
      %587 = vmatprep.subr.mxu0 0.0
      %588 = vmatpush1.msra.mxu0 0.0
      %589 = vmatprep.subr.mxu0 0.0
      %590 = vmatpush1.msra.mxu0 0.0
      %591 = vmatprep.subr.mxu0 0.0
      %592 = vmatpush1.msra.mxu0 0.0
      %593 = vmatprep.subr.mxu0 0.0
      %594 = vmatpush1.msra.mxu0 0.0
      %595 = vmatprep.subr.mxu0 0.0
      %596 = vmatpush1.msra.mxu0 0.0
      %597 = vmatprep.subr.mxu0 0.0
      %598 = vmatpush1.msra.mxu0 0.0
      %599 = vmatprep.subr.mxu0 0.0
      %600 = vmatpush1.msra.mxu0 0.0
      %601 = vmatprep.subr.mxu0 0.0
      %602 = vmatpush1.msra.mxu0 0.0
      %603 = vmatprep.subr.mxu0 0.0
      %604 = vmatpush1.msra.mxu0 0.0
      %605 = vmatprep.subr.mxu0 0.0
      %606 = vmatpush1.msra.mxu0 0.0
      %607 = vmatprep.mubr.f32.mxu0 0.0
      %608 = vmatmul.mubr.f32.gmra.mrb[0].mxu0 %v517
      %v609 = vpop.f32.mrb[0].mxu0
      %v610 = vadd.f32 0.0, %v609
      %v611 = vpop.f32.mrb[0].mxu0
      %v612 = vadd.f32 0.0, %v611
      %613 = vmatprep.mubr.f32.mxu0 0.0
      %614 = vmatmul.mubr.f32.gmra.mrb[0].mxu0 %v520
      %v615 = vpop.f32.mrb[0].mxu0
      %v616 = vadd.f32 0.0, %v615
      %v617 = vpop.f32.mrb[0].mxu0
      %v618 = vadd.f32 0.0, %v617
      %619 = vmatprep.mubr.f32.mxu0 0.0
      %620 = vmatmul.mubr.f32.gmra.mrb[0].mxu0 %v523
      %v621 = vpop.f32.mrb[0].mxu0
      %v622 = vadd.f32 0.0, %v621
      %v623 = vpop.f32.mrb[0].mxu0
      %v624 = vadd.f32 0.0, %v623
      %625 = vmatprep.mubr.f32.mxu0 0.0
      %626 = vmatmul.mubr.f32.gmra.mrb[0].mxu0 %v526
      %v627 = vpop.f32.mrb[0].mxu0
      %v628 = vadd.f32 0.0, %v627
      %v629 = vpop.f32.mrb[0].mxu0
      %v630 = vadd.f32 0.0, %v629
      %631 = vmatprep.mubr.f32.mxu0 0.0
      %632 = vmatmul.mubr.f32.gmra.mrb[0].mxu0 %v529
      %v633 = vpop.f32.mrb[0].mxu0
      %v634 = vadd.f32 0.0, %v633
      %v635 = vpop.f32.mrb[0].mxu0
      %v636 = vadd.f32 0.0, %v635
      %637 = vmatprep.mubr.f32.mxu0 0.0
      %638 = vmatmul.mubr.f32.gmra.mrb[0].mxu0 %v532
      %v639 = vpop.f32.mrb[0].mxu0
      %v640 = vadd.f32 0.0, %v639
      %v641 = vpop.f32.mrb[0].mxu0
      %v642 = vadd.f32 0.0, %v641
      %643 = vmatprep.mubr.f32.mxu0 0.0
      %644 = vmatmul.mubr.f32.gmra.mrb[0].mxu0 %v535
      %v645 = vpop.f32.mrb[0].mxu0
      %v646 = vadd.f32 0.0, %v645
      %v647 = vpop.f32.mrb[0].mxu0
      %v648 = vadd.f32 0.0, %v647
      %649 = vmatprep.mubr.f32.mxu0 0.0
      %650 = vmatmul.mubr.f32.gmra.mrb[0].mxu0 %v538
      %v651 = vpop.f32.mrb[0].mxu0
      %v652 = vadd.f32 0.0, %v651
      %v653 = vpop.f32.mrb[0].mxu0
      %v654 = vadd.f32 0.0, %v653
      %655 = vmatprep.mubr.f32.mxu0 0.0
      %656 = vmatmul.mubr.f32.gmra.mrb[0].mxu0 %v541
      %v657 = vpop.f32.mrb[0].mxu0
      %v658 = vadd.f32 0.0, %v657
      %v659 = vpop.f32.mrb[0].mxu0
      %v660 = vadd.f32 0.0, %v659
      %661 = vdwg.mxu0
      %662 = vmatprep.subr.mxu0 %v478
      %663 = vmatpush1.msra.mxu0 %v477
      %664 = vmatprep.subr.mxu0 %v490
      %665 = vmatpush1.msra.mxu0 %v494
      %666 = vmatprep.subr.mxu0 %v506
      %667 = vmatpush1.msra.mxu0 %v510
      %668 = vmatprep.subr.mxu0 0.0
      %669 = vmatpush1.msra.mxu0 0.0
      %670 = vmatprep.subr.mxu0 0.0
      %671 = vmatpush1.msra.mxu0 0.0
      %672 = vmatprep.subr.mxu0 0.0
      %673 = vmatpush1.msra.mxu0 0.0
      %674 = vmatprep.subr.mxu0 0.0
      %675 = vmatpush1.msra.mxu0 0.0
      %676 = vmatprep.subr.mxu0 0.0
      %677 = vmatpush1.msra.mxu0 0.0
      %678 = vmatprep.subr.mxu0 0.0
      %679 = vmatpush1.msra.mxu0 0.0
      %680 = vmatprep.subr.mxu0 0.0
      %681 = vmatpush1.msra.mxu0 0.0
      %682 = vmatprep.subr.mxu0 0.0
      %683 = vmatpush1.msra.mxu0 0.0
      %684 = vmatprep.subr.mxu0 0.0
      %685 = vmatpush1.msra.mxu0 0.0
      %686 = vmatprep.subr.mxu0 0.0
      %687 = vmatpush1.msra.mxu0 0.0
      %688 = vmatprep.subr.mxu0 0.0
      %689 = vmatpush1.msra.mxu0 0.0
      %690 = vmatprep.subr.mxu0 0.0
      %691 = vmatpush1.msra.mxu0 0.0
      %692 = vmatprep.subr.mxu0 0.0
      %693 = vmatpush1.msra.mxu0 0.0
      %694 = vmatprep.subr.mxu0 0.0
      %695 = vmatpush1.msra.mxu0 0.0
      %696 = vmatprep.subr.mxu0 0.0
      %697 = vmatpush1.msra.mxu0 0.0
      %698 = vmatprep.subr.mxu0 0.0
      %699 = vmatpush1.msra.mxu0 0.0
      %700 = vmatprep.subr.mxu0 0.0
      %701 = vmatpush1.msra.mxu0 0.0
      %702 = vmatprep.subr.mxu0 0.0
      %703 = vmatpush1.msra.mxu0 0.0
      %704 = vmatprep.subr.mxu0 0.0
      %705 = vmatpush1.msra.mxu0 0.0
      %706 = vmatprep.subr.mxu0 0.0
      %707 = vmatpush1.msra.mxu0 0.0
      %708 = vmatprep.subr.mxu0 0.0
      %709 = vmatpush1.msra.mxu0 0.0
      %710 = vmatprep.subr.mxu0 0.0
      %711 = vmatpush1.msra.mxu0 0.0
      %712 = vmatprep.subr.mxu0 0.0
      %713 = vmatpush1.msra.mxu0 0.0
      %714 = vmatprep.subr.mxu0 0.0
      %715 = vmatpush1.msra.mxu0 0.0
      %716 = vmatprep.subr.mxu0 0.0
      %717 = vmatpush1.msra.mxu0 0.0
      %718 = vmatprep.subr.mxu0 0.0
      %719 = vmatpush1.msra.mxu0 0.0
      %720 = vmatprep.subr.mxu0 0.0
      %721 = vmatpush1.msra.mxu0 0.0
      %722 = vmatprep.subr.mxu0 0.0
      %723 = vmatpush1.msra.mxu0 0.0
      %724 = vmatprep.subr.mxu0 0.0
      %725 = vmatpush1.msra.mxu0 0.0
      %726 = vmatprep.mubr.f32.mxu0 0.0
      %727 = vmatmul.mubr.f32.gmra.mrb[0].mxu0 %v517
      %v728 = vpop.f32.mrb[0].mxu0
      %v729 = vadd.f32 0.0, %v728
      %v730 = vpop.f32.mrb[0].mxu0
      %731 = vmatprep.mubr.f32.mxu0 0.0
      %732 = vmatmul.mubr.f32.gmra.mrb[0].mxu0 %v520
      %v733 = vpop.f32.mrb[0].mxu0
      %v734 = vadd.f32 0.0, %v733
      %v735 = vpop.f32.mrb[0].mxu0
      %736 = vmatprep.mubr.f32.mxu0 0.0
      %737 = vmatmul.mubr.f32.gmra.mrb[0].mxu0 %v523
      %v738 = vpop.f32.mrb[0].mxu0
      %v739 = vadd.f32 0.0, %v738
      %v740 = vpop.f32.mrb[0].mxu0
      %741 = vmatprep.mubr.f32.mxu0 0.0
      %742 = vmatmul.mubr.f32.gmra.mrb[0].mxu0 %v526
      %v743 = vpop.f32.mrb[0].mxu0
      %v744 = vadd.f32 0.0, %v743
      %v745 = vpop.f32.mrb[0].mxu0
      %v746 = vadd.f32 0.0, %v745
      %747 = vmatprep.mubr.f32.mxu0 0.0
      %748 = vmatmul.mubr.f32.gmra.mrb[0].mxu0 %v529
      %v749 = vpop.f32.mrb[0].mxu0
      %v750 = vadd.f32 0.0, %v749
      %v751 = vpop.f32.mrb[0].mxu0
      %v752 = vadd.f32 0.0, %v751
      %753 = vmatprep.mubr.f32.mxu0 0.0
      %754 = vmatmul.mubr.f32.gmra.mrb[0].mxu0 %v532
      %v755 = vpop.f32.mrb[0].mxu0
      %v756 = vadd.f32 0.0, %v755
      %v757 = vpop.f32.mrb[0].mxu0
      %v758 = vadd.f32 0.0, %v757
      %759 = vmatprep.mubr.f32.mxu0 0.0
      %760 = vmatmul.mubr.f32.gmra.mrb[0].mxu0 %v535
      %v761 = vpop.f32.mrb[0].mxu0
      %v762 = vadd.f32 0.0, %v761
      %v763 = vpop.f32.mrb[0].mxu0
      %v764 = vadd.f32 0.0, %v763
      %765 = vmatprep.mubr.f32.mxu0 0.0
      %766 = vmatmul.mubr.f32.gmra.mrb[0].mxu0 %v538
      %v767 = vpop.f32.mrb[0].mxu0
      %v768 = vadd.f32 0.0, %v767
      %v769 = vpop.f32.mrb[0].mxu0
      %v770 = vadd.f32 0.0, %v769
      %771 = vmatprep.mubr.f32.mxu0 0.0
      %772 = vmatmul.mubr.f32.gmra.mrb[0].mxu0 %v541
      %v773 = vpop.f32.mrb[0].mxu0
      %v774 = vadd.f32 0.0, %v773
      %v775 = vpop.f32.mrb[0].mxu0
      %v776 = vadd.f32 0.0, %v775
      %777 = vdwg.mxu0
      %790 = vrot.lane.b32.xlu0 %v628, 110
      %v791 = vpop.permute.xlu0 %790
      %792 = vrot.lane.b32.xlu0 %v630, 110
      %v793 = vpop.permute.xlu0 %792
      %794 = vrot.lane.b32.xlu0 %v744, 110
      %v795 = vpop.permute.xlu0 %794
      %796 = vrot.lane.b32.xlu0 %v746, 110
      %v797 = vpop.permute.xlu0 %796
      %798 = vrot.lane.b32.xlu0 %v634, 110
      %v799 = vpop.permute.xlu0 %798
      %800 = vrot.lane.b32.xlu0 %v636, 110
      %v801 = vpop.permute.xlu0 %800
      %802 = vrot.lane.b32.xlu0 %v750, 110
      %v803 = vpop.permute.xlu0 %802
      %804 = vrot.lane.b32.xlu0 %v752, 110
      %v805 = vpop.permute.xlu0 %804
      %806 = vrot.lane.b32.xlu0 %v640, 110
      %v807 = vpop.permute.xlu0 %806
      %808 = vrot.lane.b32.xlu0 %v642, 110
      %v809 = vpop.permute.xlu0 %808
      %810 = vrot.lane.b32.xlu0 %v756, 110
      %v811 = vpop.permute.xlu0 %810
      %812 = vrot.lane.b32.xlu0 %v758, 110
      %v813 = vpop.permute.xlu0 %812
      %vm814 = vcmask 900096
      %v815 = vsel %vm814, %v791, %v793
      %v816 = vsel %vm814, %v793, %v795
      %v817 = vsel %vm814, %v795, %v797
      %v818 = vsel %vm814, %v799, %v801
      %v819 = vsel %vm814, %v801, %v803
      %v820 = vsel %vm814, %v803, %v805
      %v821 = vsel %vm814, %v807, %v809
      %v822 = vsel %vm814, %v809, %v811
      %v823 = vsel %vm814, %v811, %v813
      %v833 = vadd.f32 %v610, %v815
      %v834 = vadd.f32 %v612, %v816
      %v835 = vadd.f32 %v729, %v817
      %v836 = vadd.f32 %v616, %v818
      %v837 = vadd.f32 %v618, %v819
      %v838 = vadd.f32 %v734, %v820
      %v839 = vadd.f32 %v622, %v821
      %v840 = vadd.f32 %v624, %v822
      %v841 = vadd.f32 %v739, %v823
      %854 = vrot.lane.b32.xlu0 %v646, 92
      %v855 = vpop.permute.xlu0 %854
      %856 = vrot.lane.b32.xlu0 %v648, 92
      %v857 = vpop.permute.xlu0 %856
      %858 = vrot.lane.b32.xlu0 %v762, 92
      %v859 = vpop.permute.xlu0 %858
      %860 = vrot.lane.b32.xlu0 %v764, 92
      %v861 = vpop.permute.xlu0 %860
      %862 = vrot.lane.b32.xlu0 %v652, 92
      %v863 = vpop.permute.xlu0 %862
      %864 = vrot.lane.b32.xlu0 %v654, 92
      %v865 = vpop.permute.xlu0 %864
      %866 = vrot.lane.b32.xlu0 %v768, 92
      %v867 = vpop.permute.xlu0 %866
      %868 = vrot.lane.b32.xlu0 %v770, 92
      %v869 = vpop.permute.xlu0 %868
      %870 = vrot.lane.b32.xlu0 %v658, 92
      %v871 = vpop.permute.xlu0 %870
      %872 = vrot.lane.b32.xlu0 %v660, 92
      %v873 = vpop.permute.xlu0 %872
      %874 = vrot.lane.b32.xlu0 %v774, 92
      %v875 = vpop.permute.xlu0 %874
      %876 = vrot.lane.b32.xlu0 %v776, 92
      %v877 = vpop.permute.xlu0 %876
      %vm878 = vcmask 752640
      %v879 = vsel %vm878, %v855, %v857
      %v880 = vsel %vm878, %v857, %v859
      %v881 = vsel %vm878, %v859, %v861
      %v882 = vsel %vm878, %v863, %v865
      %v883 = vsel %vm878, %v865, %v867
      %v884 = vsel %vm878, %v867, %v869
      %v885 = vsel %vm878, %v871, %v873
      %v886 = vsel %vm878, %v873, %v875
      %v887 = vsel %vm878, %v875, %v877
      %v897 = vadd.f32 %v833, %v879
      %v898 = vadd.f32 %v834, %v880
      %v899 = vadd.f32 %v835, %v881
      %v900 = vadd.f32 %v836, %v882
      %v901 = vadd.f32 %v837, %v883
      %v902 = vadd.f32 %v838, %v884
      %v903 = vadd.f32 %v839, %v885
      %v904 = vadd.f32 %v840, %v886
      %v905 = vadd.f32 %v841, %v887
      %907 = vset.pattern.permute.xlu0 0
      %908 = vperm.xlu0 %907, %v472
      %v909 = vpop.permute.xlu0 %908
      %912 = vset.pattern.permute.xlu0 0
      %913 = vperm.xlu0 %912, %v473
      %v914 = vpop.permute.xlu0 %913
      %917 = vset.pattern.permute.xlu0 0
      %918 = vperm.xlu0 %917, %v474
      %v919 = vpop.permute.xlu0 %918
      %v921 = vadd.f32 %v897, %v909
      %v922 = vadd.f32 %v898, %v909
      %v923 = vadd.f32 %v899, %v909
      %v924 = vadd.f32 %v900, %v914
      %v925 = vadd.f32 %v901, %v914
      %v926 = vadd.f32 %v902, %v914
      %v927 = vadd.f32 %v903, %v919
      %v928 = vadd.f32 %v904, %v919
      %v929 = vadd.f32 %v905, %v919
      %930 = vrot.lane.b32.xlu0 %v475, 109
      %v931 = vpop.permute.xlu0 %930
      %932 = vrot.lane.b32.xlu0 %v476, 109
      %v933 = vpop.permute.xlu0 %932
      %934 = vrot.lane.b32.xlu0 %v477, 109
      %v935 = vpop.permute.xlu0 %934
      %936 = vrot.lane.b32.xlu0 %v478, 109
      %v937 = vpop.permute.xlu0 %936
      %vm938 = vcmask 891904
      %v939 = vsel %vm938, %v931, %v933
      %v940 = vsel %vm938, %v933, %v935
      %v941 = vsel %vm938, %v935, %v937
      %v945 = vadd.f32 %v921, %v939
      %v946 = vadd.f32 %v922, %v940
      %v947 = vadd.f32 %v923, %v941
      %v948 = vld [vmem:[%s2 + $0x28] sm:$0xff]
      %v949 = vld [vmem:[%s3 + $0x60] sm:$0xff]
      %951 = vset.pattern.permute.xlu0 0
      %952 = vperm.xlu0 %951, %v949
      %v953 = vpop.permute.xlu0 %952
      %vm955 = vcmask 130048
      %v957 = vsel %vm955, %v948, 0
      %959 = vmatprep.subr.mxu0 %v925
      %960 = vmatpush1.msra.mxu0 %v924
      %961 = vmatprep.subr.mxu0 %v928
      %962 = vmatpush1.msra.mxu0 %v927
      %963 = vmatprep.subr.mxu0 0.0
      %964 = vmatpush1.msra.mxu0 0.0
      %965 = vmatprep.subr.mxu0 0.0
      %966 = vmatpush1.msra.mxu0 0.0
      %967 = vmatprep.subr.mxu0 0.0
      %968 = vmatpush1.msra.mxu0 0.0
      %969 = vmatprep.subr.mxu0 0.0
      %970 = vmatpush1.msra.mxu0 0.0
      %971 = vmatprep.subr.mxu0 0.0
      %972 = vmatpush1.msra.mxu0 0.0
      %973 = vmatprep.subr.mxu0 0.0
      %974 = vmatpush1.msra.mxu0 0.0
      %975 = vmatprep.subr.mxu0 0.0
      %976 = vmatpush1.msra.mxu0 0.0
      %977 = vmatprep.subr.mxu0 0.0
      %978 = vmatpush1.msra.mxu0 0.0
      %979 = vmatprep.subr.mxu0 0.0
      %980 = vmatpush1.msra.mxu0 0.0
      %981 = vmatprep.subr.mxu0 0.0
      %982 = vmatpush1.msra.mxu0 0.0
      %983 = vmatprep.subr.mxu0 0.0
      %984 = vmatpush1.msra.mxu0 0.0
      %985 = vmatprep.subr.mxu0 0.0
      %986 = vmatpush1.msra.mxu0 0.0
      %987 = vmatprep.subr.mxu0 0.0
      %988 = vmatpush1.msra.mxu0 0.0
      %989 = vmatprep.subr.mxu0 0.0
      %990 = vmatpush1.msra.mxu0 0.0
      %991 = vmatprep.subr.mxu0 0.0
      %992 = vmatpush1.msra.mxu0 0.0
      %993 = vmatprep.subr.mxu0 0.0
      %994 = vmatpush1.msra.mxu0 0.0
      %995 = vmatprep.subr.mxu0 0.0
      %996 = vmatpush1.msra.mxu0 0.0
      %997 = vmatprep.subr.mxu0 0.0
      %998 = vmatpush1.msra.mxu0 0.0
      %999 = vmatprep.subr.mxu0 0.0
      %1000 = vmatpush1.msra.mxu0 0.0
      %1001 = vmatprep.subr.mxu0 0.0
      %1002 = vmatpush1.msra.mxu0 0.0
      %1003 = vmatprep.subr.mxu0 0.0
      %1004 = vmatpush1.msra.mxu0 0.0
      %1005 = vmatprep.subr.mxu0 0.0
      %1006 = vmatpush1.msra.mxu0 0.0
      %1007 = vmatprep.subr.mxu0 0.0
      %1008 = vmatpush1.msra.mxu0 0.0
      %1009 = vmatprep.subr.mxu0 0.0
      %1010 = vmatpush1.msra.mxu0 0.0
      %1011 = vmatprep.subr.mxu0 0.0
      %1012 = vmatpush1.msra.mxu0 0.0
      %1013 = vmatprep.subr.mxu0 0.0
      %1014 = vmatpush1.msra.mxu0 0.0
      %1015 = vmatprep.subr.mxu0 0.0
      %1016 = vmatpush1.msra.mxu0 0.0
      %1017 = vmatprep.subr.mxu0 0.0
      %1018 = vmatpush1.msra.mxu0 0.0
      %1019 = vmatprep.subr.mxu0 0.0
      %1020 = vmatpush1.msra.mxu0 0.0
      %1021 = vmatprep.subr.mxu0 0.0
      %1022 = vmatpush1.msra.mxu0 0.0
      %1023 = vmatprep.mubr.f32.mxu0 0.0
      %1024 = vmatmul.mubr.f32.gmra.mrb[0].mxu0 %v957
      %v1025 = vpop.f32.mrb[0].mxu0
      %v1026 = vadd.f32 %v953, %v1025
      %v1027 = vpop.f32.mrb[0].mxu0
      %v1028 = vadd.f32 %v953, %v1027
      %1029 = vdwg.mxu0
      %1030 = vmatprep.subr.mxu0 0.0
      %1031 = vmatpush1.msra.mxu0 %v926
      %1032 = vmatprep.subr.mxu0 0.0
      %1033 = vmatpush1.msra.mxu0 %v929
      %1034 = vmatprep.subr.mxu0 0.0
      %1035 = vmatpush1.msra.mxu0 0.0
      %1036 = vmatprep.subr.mxu0 0.0
      %1037 = vmatpush1.msra.mxu0 0.0
      %1038 = vmatprep.subr.mxu0 0.0
      %1039 = vmatpush1.msra.mxu0 0.0
      %1040 = vmatprep.subr.mxu0 0.0
      %1041 = vmatpush1.msra.mxu0 0.0
      %1042 = vmatprep.subr.mxu0 0.0
      %1043 = vmatpush1.msra.mxu0 0.0
      %1044 = vmatprep.subr.mxu0 0.0
      %1045 = vmatpush1.msra.mxu0 0.0
      %1046 = vmatprep.subr.mxu0 0.0
      %1047 = vmatpush1.msra.mxu0 0.0
      %1048 = vmatprep.subr.mxu0 0.0
      %1049 = vmatpush1.msra.mxu0 0.0
      %1050 = vmatprep.subr.mxu0 0.0
      %1051 = vmatpush1.msra.mxu0 0.0
      %1052 = vmatprep.subr.mxu0 0.0
      %1053 = vmatpush1.msra.mxu0 0.0
      %1054 = vmatprep.subr.mxu0 0.0
      %1055 = vmatpush1.msra.mxu0 0.0
      %1056 = vmatprep.subr.mxu0 0.0
      %1057 = vmatpush1.msra.mxu0 0.0
      %1058 = vmatprep.subr.mxu0 0.0
      %1059 = vmatpush1.msra.mxu0 0.0
      %1060 = vmatprep.subr.mxu0 0.0
      %1061 = vmatpush1.msra.mxu0 0.0
      %1062 = vmatprep.subr.mxu0 0.0
      %1063 = vmatpush1.msra.mxu0 0.0
      %1064 = vmatprep.subr.mxu0 0.0
      %1065 = vmatpush1.msra.mxu0 0.0
      %1066 = vmatprep.subr.mxu0 0.0
      %1067 = vmatpush1.msra.mxu0 0.0
      %1068 = vmatprep.subr.mxu0 0.0
      %1069 = vmatpush1.msra.mxu0 0.0
      %1070 = vmatprep.subr.mxu0 0.0
      %1071 = vmatpush1.msra.mxu0 0.0
      %1072 = vmatprep.subr.mxu0 0.0
      %1073 = vmatpush1.msra.mxu0 0.0
      %1074 = vmatprep.subr.mxu0 0.0
      %1075 = vmatpush1.msra.mxu0 0.0
      %1076 = vmatprep.subr.mxu0 0.0
      %1077 = vmatpush1.msra.mxu0 0.0
      %1078 = vmatprep.subr.mxu0 0.0
      %1079 = vmatpush1.msra.mxu0 0.0
      %1080 = vmatprep.subr.mxu0 0.0
      %1081 = vmatpush1.msra.mxu0 0.0
      %1082 = vmatprep.subr.mxu0 0.0
      %1083 = vmatpush1.msra.mxu0 0.0
      %1084 = vmatprep.subr.mxu0 0.0
      %1085 = vmatpush1.msra.mxu0 0.0
      %1086 = vmatprep.subr.mxu0 0.0
      %1087 = vmatpush1.msra.mxu0 0.0
      %1088 = vmatprep.subr.mxu0 0.0
      %1089 = vmatpush1.msra.mxu0 0.0
      %1090 = vmatprep.subr.mxu0 0.0
      %1091 = vmatpush1.msra.mxu0 0.0
      %1092 = vmatprep.subr.mxu0 0.0
      %1093 = vmatpush1.msra.mxu0 0.0
      %1094 = vmatprep.mubr.f32.mxu0 0.0
      %1095 = vmatmul.mubr.f32.gmra.mrb[0].mxu0 %v957
      %v1096 = vpop.f32.mrb[0].mxu0
      %v1097 = vadd.f32 %v953, %v1096
      %v1098 = vpop.f32.mrb[0].mxu0
      %1099 = vdwg.mxu0
      %v1100 = vadd.f32 %v945, %v1026
      %v1101 = vadd.f32 %v946, %v1028
      %v1102 = vadd.f32 %v947, %v1097
      %v1103 = vld [vmem:[%s1 + $0x48] sm:$0xff]
      %v1104 = vld [vmem:[%s1 + $0x50] sm:$0xff]
      %v1105 = vld [vmem:[%s1 + $0x58] sm:$0xff]
      %v1106 = vld [vmem:[%s3 + $0x40] sm:$0xff]
      %v1107 = vld [vmem:[#allocation2] sm:$0xff]
      %v1108 = vld [vmem:[#allocation2 + $0x8] sm:$0xff]
      %v1109 = vld [vmem:[#allocation2 + $0x10] sm:$0xff]
      %v1110 = vld [vmem:[#allocation2 + $0x18] sm:$0xff]
      %v1111 = vld [vmem:[#allocation2 + $0x20] sm:$0xff]
      %v1112 = vld [vmem:[#allocation2 + $0x28] sm:$0xff]
      %v1113 = vld [vmem:[#allocation2 + $0x30] sm:$0xff]
      %v1114 = vld [vmem:[#allocation2 + $0x38] sm:$0xff]
      %1123 = vrot.lane.b32.xlu0 %v1107, 127
      %v1124 = vpop.permute.xlu0 %1123
      %1125 = vrot.lane.b32.xlu0 %v1108, 127
      %v1126 = vpop.permute.xlu0 %1125
      %1127 = vrot.lane.b32.xlu0 %v1109, 127
      %v1128 = vpop.permute.xlu0 %1127
      %1129 = vrot.lane.b32.xlu0 %v1110, 127
      %v1130 = vpop.permute.xlu0 %1129
      %1131 = vrot.lane.b32.xlu0 %v1111, 127
      %v1132 = vpop.permute.xlu0 %1131
      %1133 = vrot.lane.b32.xlu0 %v1112, 127
      %v1134 = vpop.permute.xlu0 %1133
      %1135 = vrot.lane.b32.xlu0 %v1113, 127
      %v1136 = vpop.permute.xlu0 %1135
      %1137 = vrot.lane.b32.xlu0 %v1114, 127
      %v1138 = vpop.permute.xlu0 %1137
      %v1139 = vsel %vm491, %v1124, %v1126
      %v1140 = vsel %vm491, %v1126, %v1128
      %v1141 = vsel %vm491, %v1128, %v1130
      %v1142 = vsel %vm491, %v1132, %v1134
      %v1143 = vsel %vm491, %v1134, %v1136
      %v1144 = vsel %vm491, %v1136, %v1138
      %1153 = vrot.lane.b32.xlu0 %v1107, 126
      %v1154 = vpop.permute.xlu0 %1153
      %1155 = vrot.lane.b32.xlu0 %v1108, 126
      %v1156 = vpop.permute.xlu0 %1155
      %1157 = vrot.lane.b32.xlu0 %v1109, 126
      %v1158 = vpop.permute.xlu0 %1157
      %1159 = vrot.lane.b32.xlu0 %v1110, 126
      %v1160 = vpop.permute.xlu0 %1159
      %1161 = vrot.lane.b32.xlu0 %v1111, 126
      %v1162 = vpop.permute.xlu0 %1161
      %1163 = vrot.lane.b32.xlu0 %v1112, 126
      %v1164 = vpop.permute.xlu0 %1163
      %1165 = vrot.lane.b32.xlu0 %v1113, 126
      %v1166 = vpop.permute.xlu0 %1165
      %1167 = vrot.lane.b32.xlu0 %v1114, 126
      %v1168 = vpop.permute.xlu0 %1167
      %v1169 = vsel %vm507, %v1154, %v1156
      %v1170 = vsel %vm507, %v1156, %v1158
      %v1171 = vsel %vm507, %v1158, %v1160
      %v1172 = vsel %vm507, %v1162, %v1164
      %v1173 = vsel %vm507, %v1164, %v1166
      %v1174 = vsel %vm507, %v1166, %v1168
      %vm1183 = vcmask 392192
      %v1185 = vsel %vm1183, %v1103, 0
      %v1188 = vsel %vm1183, %v1104, 0
      %v1191 = vsel %vm1183, %v1105, 0
      %1193 = vmatprep.subr.mxu0 %v1108
      %1194 = vmatpush1.msra.mxu0 %v1107
      %1195 = vmatprep.subr.mxu0 %v1112
      %1196 = vmatpush1.msra.mxu0 %v1111
      %1197 = vmatprep.subr.mxu0 %v1140
      %1198 = vmatpush1.msra.mxu0 %v1139
      %1199 = vmatprep.subr.mxu0 %v1143
      %1200 = vmatpush1.msra.mxu0 %v1142
      %1201 = vmatprep.subr.mxu0 %v1170
      %1202 = vmatpush1.msra.mxu0 %v1169
      %1203 = vmatprep.subr.mxu0 %v1173
      %1204 = vmatpush1.msra.mxu0 %v1172
      %1205 = vmatprep.subr.mxu0 0.0
      %1206 = vmatpush1.msra.mxu0 0.0
      %1207 = vmatprep.subr.mxu0 0.0
      %1208 = vmatpush1.msra.mxu0 0.0
      %1209 = vmatprep.subr.mxu0 0.0
      %1210 = vmatpush1.msra.mxu0 0.0
      %1211 = vmatprep.subr.mxu0 0.0
      %1212 = vmatpush1.msra.mxu0 0.0
      %1213 = vmatprep.subr.mxu0 0.0
      %1214 = vmatpush1.msra.mxu0 0.0
      %1215 = vmatprep.subr.mxu0 0.0
      %1216 = vmatpush1.msra.mxu0 0.0
      %1217 = vmatprep.subr.mxu0 0.0
      %1218 = vmatpush1.msra.mxu0 0.0
      %1219 = vmatprep.subr.mxu0 0.0
      %1220 = vmatpush1.msra.mxu0 0.0
      %1221 = vmatprep.subr.mxu0 0.0
      %1222 = vmatpush1.msra.mxu0 0.0
      %1223 = vmatprep.subr.mxu0 0.0
      %1224 = vmatpush1.msra.mxu0 0.0
      %1225 = vmatprep.subr.mxu0 0.0
      %1226 = vmatpush1.msra.mxu0 0.0
      %1227 = vmatprep.subr.mxu0 0.0
      %1228 = vmatpush1.msra.mxu0 0.0
      %1229 = vmatprep.subr.mxu0 0.0
      %1230 = vmatpush1.msra.mxu0 0.0
      %1231 = vmatprep.subr.mxu0 0.0
      %1232 = vmatpush1.msra.mxu0 0.0
      %1233 = vmatprep.subr.mxu0 0.0
      %1234 = vmatpush1.msra.mxu0 0.0
      %1235 = vmatprep.subr.mxu0 0.0
      %1236 = vmatpush1.msra.mxu0 0.0
      %1237 = vmatprep.subr.mxu0 0.0
      %1238 = vmatpush1.msra.mxu0 0.0
      %1239 = vmatprep.subr.mxu0 0.0
      %1240 = vmatpush1.msra.mxu0 0.0
      %1241 = vmatprep.subr.mxu0 0.0
      %1242 = vmatpush1.msra.mxu0 0.0
      %1243 = vmatprep.subr.mxu0 0.0
      %1244 = vmatpush1.msra.mxu0 0.0
      %1245 = vmatprep.subr.mxu0 0.0
      %1246 = vmatpush1.msra.mxu0 0.0
      %1247 = vmatprep.subr.mxu0 0.0
      %1248 = vmatpush1.msra.mxu0 0.0
      %1249 = vmatprep.subr.mxu0 0.0
      %1250 = vmatpush1.msra.mxu0 0.0
      %1251 = vmatprep.subr.mxu0 0.0
      %1252 = vmatpush1.msra.mxu0 0.0
      %1253 = vmatprep.subr.mxu0 0.0
      %1254 = vmatpush1.msra.mxu0 0.0
      %1255 = vmatprep.subr.mxu0 0.0
      %1256 = vmatpush1.msra.mxu0 0.0
      %1257 = vmatprep.mubr.f32.mxu0 0.0
      %1258 = vmatmul.mubr.f32.gmra.mrb[0].mxu0 %v1185
      %v1259 = vpop.f32.mrb[0].mxu0
      %v1260 = vadd.f32 0.0, %v1259
      %v1261 = vpop.f32.mrb[0].mxu0
      %v1262 = vadd.f32 0.0, %v1261
      %1263 = vmatprep.mubr.f32.mxu0 0.0
      %1264 = vmatmul.mubr.f32.gmra.mrb[0].mxu0 %v1188
      %v1265 = vpop.f32.mrb[0].mxu0
      %v1266 = vadd.f32 0.0, %v1265
      %v1267 = vpop.f32.mrb[0].mxu0
      %v1268 = vadd.f32 0.0, %v1267
      %1269 = vmatprep.mubr.f32.mxu0 0.0
      %1270 = vmatmul.mubr.f32.gmra.mrb[0].mxu0 %v1191
      %v1271 = vpop.f32.mrb[0].mxu0
      %v1272 = vadd.f32 0.0, %v1271
      %v1273 = vpop.f32.mrb[0].mxu0
      %v1274 = vadd.f32 0.0, %v1273
      %1275 = vdwg.mxu0
      %1276 = vmatprep.subr.mxu0 %v1110
      %1277 = vmatpush1.msra.mxu0 %v1109
      %1278 = vmatprep.subr.mxu0 %v1114
      %1279 = vmatpush1.msra.mxu0 %v1113
      %1280 = vmatprep.subr.mxu0 %v1130
      %1281 = vmatpush1.msra.mxu0 %v1141
      %1282 = vmatprep.subr.mxu0 %v1138
      %1283 = vmatpush1.msra.mxu0 %v1144
      %1284 = vmatprep.subr.mxu0 %v1160
      %1285 = vmatpush1.msra.mxu0 %v1171
      %1286 = vmatprep.subr.mxu0 %v1168
      %1287 = vmatpush1.msra.mxu0 %v1174
      %1288 = vmatprep.subr.mxu0 0.0
      %1289 = vmatpush1.msra.mxu0 0.0
      %1290 = vmatprep.subr.mxu0 0.0
      %1291 = vmatpush1.msra.mxu0 0.0
      %1292 = vmatprep.subr.mxu0 0.0
      %1293 = vmatpush1.msra.mxu0 0.0
      %1294 = vmatprep.subr.mxu0 0.0
      %1295 = vmatpush1.msra.mxu0 0.0
      %1296 = vmatprep.subr.mxu0 0.0
      %1297 = vmatpush1.msra.mxu0 0.0
      %1298 = vmatprep.subr.mxu0 0.0
      %1299 = vmatpush1.msra.mxu0 0.0
      %1300 = vmatprep.subr.mxu0 0.0
      %1301 = vmatpush1.msra.mxu0 0.0
      %1302 = vmatprep.subr.mxu0 0.0
      %1303 = vmatpush1.msra.mxu0 0.0
      %1304 = vmatprep.subr.mxu0 0.0
      %1305 = vmatpush1.msra.mxu0 0.0
      %1306 = vmatprep.subr.mxu0 0.0
      %1307 = vmatpush1.msra.mxu0 0.0
      %1308 = vmatprep.subr.mxu0 0.0
      %1309 = vmatpush1.msra.mxu0 0.0
      %1310 = vmatprep.subr.mxu0 0.0
      %1311 = vmatpush1.msra.mxu0 0.0
      %1312 = vmatprep.subr.mxu0 0.0
      %1313 = vmatpush1.msra.mxu0 0.0
      %1314 = vmatprep.subr.mxu0 0.0
      %1315 = vmatpush1.msra.mxu0 0.0
      %1316 = vmatprep.subr.mxu0 0.0
      %1317 = vmatpush1.msra.mxu0 0.0
      %1318 = vmatprep.subr.mxu0 0.0
      %1319 = vmatpush1.msra.mxu0 0.0
      %1320 = vmatprep.subr.mxu0 0.0
      %1321 = vmatpush1.msra.mxu0 0.0
      %1322 = vmatprep.subr.mxu0 0.0
      %1323 = vmatpush1.msra.mxu0 0.0
      %1324 = vmatprep.subr.mxu0 0.0
      %1325 = vmatpush1.msra.mxu0 0.0
      %1326 = vmatprep.subr.mxu0 0.0
      %1327 = vmatpush1.msra.mxu0 0.0
      %1328 = vmatprep.subr.mxu0 0.0
      %1329 = vmatpush1.msra.mxu0 0.0
      %1330 = vmatprep.subr.mxu0 0.0
      %1331 = vmatpush1.msra.mxu0 0.0
      %1332 = vmatprep.subr.mxu0 0.0
      %1333 = vmatpush1.msra.mxu0 0.0
      %1334 = vmatprep.subr.mxu0 0.0
      %1335 = vmatpush1.msra.mxu0 0.0
      %1336 = vmatprep.subr.mxu0 0.0
      %1337 = vmatpush1.msra.mxu0 0.0
      %1338 = vmatprep.subr.mxu0 0.0
      %1339 = vmatpush1.msra.mxu0 0.0
      %1340 = vmatprep.mubr.f32.mxu0 0.0
      %1341 = vmatmul.mubr.f32.gmra.mrb[0].mxu0 %v1185
      %v1342 = vpop.f32.mrb[0].mxu0
      %v1343 = vadd.f32 0.0, %v1342
      %v1344 = vpop.f32.mrb[0].mxu0
      %1345 = vmatprep.mubr.f32.mxu0 0.0
      %1346 = vmatmul.mubr.f32.gmra.mrb[0].mxu0 %v1188
      %v1347 = vpop.f32.mrb[0].mxu0
      %v1348 = vadd.f32 0.0, %v1347
      %v1349 = vpop.f32.mrb[0].mxu0
      %v1350 = vadd.f32 0.0, %v1349
      %1351 = vmatprep.mubr.f32.mxu0 0.0
      %1352 = vmatmul.mubr.f32.gmra.mrb[0].mxu0 %v1191
      %v1353 = vpop.f32.mrb[0].mxu0
      %v1354 = vadd.f32 0.0, %v1353
      %v1355 = vpop.f32.mrb[0].mxu0
      %v1356 = vadd.f32 0.0, %v1355
      %1357 = vdwg.mxu0
      %1362 = vrot.lane.b32.xlu0 %v1266, 110
      %v1363 = vpop.permute.xlu0 %1362
      %1364 = vrot.lane.b32.xlu0 %v1268, 110
      %v1365 = vpop.permute.xlu0 %1364
      %1366 = vrot.lane.b32.xlu0 %v1348, 110
      %v1367 = vpop.permute.xlu0 %1366
      %1368 = vrot.lane.b32.xlu0 %v1350, 110
      %v1369 = vpop.permute.xlu0 %1368
      %v1370 = vsel %vm814, %v1363, %v1365
      %v1371 = vsel %vm814, %v1365, %v1367
      %v1372 = vsel %vm814, %v1367, %v1369
      %v1376 = vadd.f32 %v1260, %v1370
      %v1377 = vadd.f32 %v1262, %v1371
      %v1378 = vadd.f32 %v1343, %v1372
      %1383 = vrot.lane.b32.xlu0 %v1272, 92
      %v1384 = vpop.permute.xlu0 %1383
      %1385 = vrot.lane.b32.xlu0 %v1274, 92
      %v1386 = vpop.permute.xlu0 %1385
      %1387 = vrot.lane.b32.xlu0 %v1354, 92
      %v1388 = vpop.permute.xlu0 %1387
      %1389 = vrot.lane.b32.xlu0 %v1356, 92
      %v1390 = vpop.permute.xlu0 %1389
      %v1391 = vsel %vm878, %v1384, %v1386
      %v1392 = vsel %vm878, %v1386, %v1388
      %v1393 = vsel %vm878, %v1388, %v1390
      %v1397 = vadd.f32 %v1376, %v1391
      %v1398 = vadd.f32 %v1377, %v1392
      %v1399 = vadd.f32 %v1378, %v1393
      %1401 = vset.pattern.permute.xlu0 0
      %1402 = vperm.xlu0 %1401, %v1106
      %v1403 = vpop.permute.xlu0 %1402
      %v1405 = vadd.f32 %v1397, %v1403
      %v1406 = vadd.f32 %v1398, %v1403
      %v1407 = vadd.f32 %v1399, %v1403
      %v1408 = vadd.f32 %v1100, %v1405
      %v1409 = vadd.f32 %v1101, %v1406
      %v1410 = vadd.f32 %v1102, %v1407
      %v1411 = vld [vmem:[%s1 + $0x60] sm:$0xff]
      %v1412 = vld [vmem:[%s1 + $0x68] sm:$0xff]
      %v1413 = vld [vmem:[%s1 + $0x70] sm:$0xff]
      %v1414 = vld [vmem:[%s1 + $0x78] sm:$0xff]
      %v1415 = vld [vmem:[%s1 + $0x80] sm:$0xff]
      %v1416 = vld [vmem:[%s1 + $0x88] sm:$0xff]
      %v1417 = vld [vmem:[%s3 + $0x48] sm:$0xff]
      %v1418 = vld [vmem:[%s3 + $0x50] sm:$0xff]
      %v1419 = vld [vmem:[#allocation2 + $0x40] sm:$0xff]
      %v1420 = vld [vmem:[#allocation2 + $0x48] sm:$0xff]
      %v1421 = vld [vmem:[#allocation2 + $0x50] sm:$0xff]
      %v1422 = vld [vmem:[#allocation2 + $0x58] sm:$0xff]
      %v1423 = vld [vmem:[#allocation2 + $0x60] sm:$0xff]
      %v1424 = vld [vmem:[#allocation2 + $0x68] sm:$0xff]
      %v1425 = vld [vmem:[#allocation2 + $0x70] sm:$0xff]
      %v1426 = vld [vmem:[#allocation2 + $0x78] sm:$0xff]
      %1435 = vrot.lane.b32.xlu0 %v1419, 127
      %v1436 = vpop.permute.xlu0 %1435
      %1437 = vrot.lane.b32.xlu0 %v1420, 127
      %v1438 = vpop.permute.xlu0 %1437
      %1439 = vrot.lane.b32.xlu0 %v1421, 127
      %v1440 = vpop.permute.xlu0 %1439
      %1441 = vrot.lane.b32.xlu0 %v1422, 127
      %v1442 = vpop.permute.xlu0 %1441
      %1443 = vrot.lane.b32.xlu0 %v1423, 127
      %v1444 = vpop.permute.xlu0 %1443
      %1445 = vrot.lane.b32.xlu0 %v1424, 127
      %v1446 = vpop.permute.xlu0 %1445
      %1447 = vrot.lane.b32.xlu0 %v1425, 127
      %v1448 = vpop.permute.xlu0 %1447
      %1449 = vrot.lane.b32.xlu0 %v1426, 127
      %v1450 = vpop.permute.xlu0 %1449
      %v1451 = vsel %vm491, %v1436, %v1438
      %v1452 = vsel %vm491, %v1438, %v1440
      %v1453 = vsel %vm491, %v1440, %v1442
      %v1454 = vsel %vm491, %v1444, %v1446
      %v1455 = vsel %vm491, %v1446, %v1448
      %v1456 = vsel %vm491, %v1448, %v1450
      %1465 = vrot.lane.b32.xlu0 %v1419, 126
      %v1466 = vpop.permute.xlu0 %1465
      %1467 = vrot.lane.b32.xlu0 %v1420, 126
      %v1468 = vpop.permute.xlu0 %1467
      %1469 = vrot.lane.b32.xlu0 %v1421, 126
      %v1470 = vpop.permute.xlu0 %1469
      %1471 = vrot.lane.b32.xlu0 %v1422, 126
      %v1472 = vpop.permute.xlu0 %1471
      %1473 = vrot.lane.b32.xlu0 %v1423, 126
      %v1474 = vpop.permute.xlu0 %1473
      %1475 = vrot.lane.b32.xlu0 %v1424, 126
      %v1476 = vpop.permute.xlu0 %1475
      %1477 = vrot.lane.b32.xlu0 %v1425, 126
      %v1478 = vpop.permute.xlu0 %1477
      %1479 = vrot.lane.b32.xlu0 %v1426, 126
      %v1480 = vpop.permute.xlu0 %1479
      %v1481 = vsel %vm507, %v1466, %v1468
      %v1482 = vsel %vm507, %v1468, %v1470
      %v1483 = vsel %vm507, %v1470, %v1472
      %v1484 = vsel %vm507, %v1474, %v1476
      %v1485 = vsel %vm507, %v1476, %v1478
      %v1486 = vsel %vm507, %v1478, %v1480
      %v1496 = vsel %vm1183, %v1411, 0
      %v1499 = vsel %vm1183, %v1412, 0
      %v1502 = vsel %vm1183, %v1413, 0
      %v1505 = vsel %vm1183, %v1414, 0
      %v1508 = vsel %vm1183, %v1415, 0
      %v1511 = vsel %vm1183, %v1416, 0
      %1513 = vmatprep.subr.mxu0 %v1420
      %1514 = vmatpush1.msra.mxu0 %v1419
      %1515 = vmatprep.subr.mxu0 %v1424
      %1516 = vmatpush1.msra.mxu0 %v1423
      %1517 = vmatprep.subr.mxu0 %v1452
      %1518 = vmatpush1.msra.mxu0 %v1451
      %1519 = vmatprep.subr.mxu0 %v1455
      %1520 = vmatpush1.msra.mxu0 %v1454
      %1521 = vmatprep.subr.mxu0 %v1482
      %1522 = vmatpush1.msra.mxu0 %v1481
      %1523 = vmatprep.subr.mxu0 %v1485
      %1524 = vmatpush1.msra.mxu0 %v1484
      %1525 = vmatprep.subr.mxu0 0.0
      %1526 = vmatpush1.msra.mxu0 0.0
      %1527 = vmatprep.subr.mxu0 0.0
      %1528 = vmatpush1.msra.mxu0 0.0
      %1529 = vmatprep.subr.mxu0 0.0
      %1530 = vmatpush1.msra.mxu0 0.0
      %1531 = vmatprep.subr.mxu0 0.0
      %1532 = vmatpush1.msra.mxu0 0.0
      %1533 = vmatprep.subr.mxu0 0.0
      %1534 = vmatpush1.msra.mxu0 0.0
      %1535 = vmatprep.subr.mxu0 0.0
      %1536 = vmatpush1.msra.mxu0 0.0
      %1537 = vmatprep.subr.mxu0 0.0
      %1538 = vmatpush1.msra.mxu0 0.0
      %1539 = vmatprep.subr.mxu0 0.0
      %1540 = vmatpush1.msra.mxu0 0.0
      %1541 = vmatprep.subr.mxu0 0.0
      %1542 = vmatpush1.msra.mxu0 0.0
      %1543 = vmatprep.subr.mxu0 0.0
      %1544 = vmatpush1.msra.mxu0 0.0
      %1545 = vmatprep.subr.mxu0 0.0
      %1546 = vmatpush1.msra.mxu0 0.0
      %1547 = vmatprep.subr.mxu0 0.0
      %1548 = vmatpush1.msra.mxu0 0.0
      %1549 = vmatprep.subr.mxu0 0.0
      %1550 = vmatpush1.msra.mxu0 0.0
      %1551 = vmatprep.subr.mxu0 0.0
      %1552 = vmatpush1.msra.mxu0 0.0
      %1553 = vmatprep.subr.mxu0 0.0
      %1554 = vmatpush1.msra.mxu0 0.0
      %1555 = vmatprep.subr.mxu0 0.0
      %1556 = vmatpush1.msra.mxu0 0.0
      %1557 = vmatprep.subr.mxu0 0.0
      %1558 = vmatpush1.msra.mxu0 0.0
      %1559 = vmatprep.subr.mxu0 0.0
      %1560 = vmatpush1.msra.mxu0 0.0
      %1561 = vmatprep.subr.mxu0 0.0
      %1562 = vmatpush1.msra.mxu0 0.0
      %1563 = vmatprep.subr.mxu0 0.0
      %1564 = vmatpush1.msra.mxu0 0.0
      %1565 = vmatprep.subr.mxu0 0.0
      %1566 = vmatpush1.msra.mxu0 0.0
      %1567 = vmatprep.subr.mxu0 0.0
      %1568 = vmatpush1.msra.mxu0 0.0
      %1569 = vmatprep.subr.mxu0 0.0
      %1570 = vmatpush1.msra.mxu0 0.0
      %1571 = vmatprep.subr.mxu0 0.0
      %1572 = vmatpush1.msra.mxu0 0.0
      %1573 = vmatprep.subr.mxu0 0.0
      %1574 = vmatpush1.msra.mxu0 0.0
      %1575 = vmatprep.subr.mxu0 0.0
      %1576 = vmatpush1.msra.mxu0 0.0
      %1577 = vmatprep.mubr.f32.mxu0 0.0
      %1578 = vmatmul.mubr.f32.gmra.mrb[0].mxu0 %v1496
      %v1579 = vpop.f32.mrb[0].mxu0
      %v1580 = vadd.f32 0.0, %v1579
      %v1581 = vpop.f32.mrb[0].mxu0
      %v1582 = vadd.f32 0.0, %v1581
      %1583 = vmatprep.mubr.f32.mxu0 0.0
      %1584 = vmatmul.mubr.f32.gmra.mrb[0].mxu0 %v1499
      %v1585 = vpop.f32.mrb[0].mxu0
      %v1586 = vadd.f32 0.0, %v1585
      %v1587 = vpop.f32.mrb[0].mxu0
      %v1588 = vadd.f32 0.0, %v1587
      %1589 = vmatprep.mubr.f32.mxu0 0.0
      %1590 = vmatmul.mubr.f32.gmra.mrb[0].mxu0 %v1502
      %v1591 = vpop.f32.mrb[0].mxu0
      %v1592 = vadd.f32 0.0, %v1591
      %v1593 = vpop.f32.mrb[0].mxu0
      %v1594 = vadd.f32 0.0, %v1593
      %1595 = vmatprep.mubr.f32.mxu0 0.0
      %1596 = vmatmul.mubr.f32.gmra.mrb[0].mxu0 %v1505
      %v1597 = vpop.f32.mrb[0].mxu0
      %v1598 = vadd.f32 0.0, %v1597
      %v1599 = vpop.f32.mrb[0].mxu0
      %v1600 = vadd.f32 0.0, %v1599
      %1601 = vmatprep.mubr.f32.mxu0 0.0
      %1602 = vmatmul.mubr.f32.gmra.mrb[0].mxu0 %v1508
      %v1603 = vpop.f32.mrb[0].mxu0
      %v1604 = vadd.f32 0.0, %v1603
      %v1605 = vpop.f32.mrb[0].mxu0
      %v1606 = vadd.f32 0.0, %v1605
      %1607 = vmatprep.mubr.f32.mxu0 0.0
      %1608 = vmatmul.mubr.f32.gmra.mrb[0].mxu0 %v1511
      %v1609 = vpop.f32.mrb[0].mxu0
      %v1610 = vadd.f32 0.0, %v1609
      %v1611 = vpop.f32.mrb[0].mxu0
      %v1612 = vadd.f32 0.0, %v1611
      %1613 = vdwg.mxu0
      %1614 = vmatprep.subr.mxu0 %v1422
      %1615 = vmatpush1.msra.mxu0 %v1421
      %1616 = vmatprep.subr.mxu0 %v1426
      %1617 = vmatpush1.msra.mxu0 %v1425
      %1618 = vmatprep.subr.mxu0 %v1442
      %1619 = vmatpush1.msra.mxu0 %v1453
      %1620 = vmatprep.subr.mxu0 %v1450
      %1621 = vmatpush1.msra.mxu0 %v1456
      %1622 = vmatprep.subr.mxu0 %v1472
      %1623 = vmatpush1.msra.mxu0 %v1483
      %1624 = vmatprep.subr.mxu0 %v1480
      %1625 = vmatpush1.msra.mxu0 %v1486
      %1626 = vmatprep.subr.mxu0 0.0
      %1627 = vmatpush1.msra.mxu0 0.0
      %1628 = vmatprep.subr.mxu0 0.0
      %1629 = vmatpush1.msra.mxu0 0.0
      %1630 = vmatprep.subr.mxu0 0.0
      %1631 = vmatpush1.msra.mxu0 0.0
      %1632 = vmatprep.subr.mxu0 0.0
      %1633 = vmatpush1.msra.mxu0 0.0
      %1634 = vmatprep.subr.mxu0 0.0
      %1635 = vmatpush1.msra.mxu0 0.0
      %1636 = vmatprep.subr.mxu0 0.0
      %1637 = vmatpush1.msra.mxu0 0.0
      %1638 = vmatprep.subr.mxu0 0.0
      %1639 = vmatpush1.msra.mxu0 0.0
      %1640 = vmatprep.subr.mxu0 0.0
      %1641 = vmatpush1.msra.mxu0 0.0
      %1642 = vmatprep.subr.mxu0 0.0
      %1643 = vmatpush1.msra.mxu0 0.0
      %1644 = vmatprep.subr.mxu0 0.0
      %1645 = vmatpush1.msra.mxu0 0.0
      %1646 = vmatprep.subr.mxu0 0.0
      %1647 = vmatpush1.msra.mxu0 0.0
      %1648 = vmatprep.subr.mxu0 0.0
      %1649 = vmatpush1.msra.mxu0 0.0
      %1650 = vmatprep.subr.mxu0 0.0
      %1651 = vmatpush1.msra.mxu0 0.0
      %1652 = vmatprep.subr.mxu0 0.0
      %1653 = vmatpush1.msra.mxu0 0.0
      %1654 = vmatprep.subr.mxu0 0.0
      %1655 = vmatpush1.msra.mxu0 0.0
      %1656 = vmatprep.subr.mxu0 0.0
      %1657 = vmatpush1.msra.mxu0 0.0
      %1658 = vmatprep.subr.mxu0 0.0
      %1659 = vmatpush1.msra.mxu0 0.0
      %1660 = vmatprep.subr.mxu0 0.0
      %1661 = vmatpush1.msra.mxu0 0.0
      %1662 = vmatprep.subr.mxu0 0.0
      %1663 = vmatpush1.msra.mxu0 0.0
      %1664 = vmatprep.subr.mxu0 0.0
      %1665 = vmatpush1.msra.mxu0 0.0
      %1666 = vmatprep.subr.mxu0 0.0
      %1667 = vmatpush1.msra.mxu0 0.0
      %1668 = vmatprep.subr.mxu0 0.0
      %1669 = vmatpush1.msra.mxu0 0.0
      %1670 = vmatprep.subr.mxu0 0.0
      %1671 = vmatpush1.msra.mxu0 0.0
      %1672 = vmatprep.subr.mxu0 0.0
      %1673 = vmatpush1.msra.mxu0 0.0
      %1674 = vmatprep.subr.mxu0 0.0
      %1675 = vmatpush1.msra.mxu0 0.0
      %1676 = vmatprep.subr.mxu0 0.0
      %1677 = vmatpush1.msra.mxu0 0.0
      %1678 = vmatprep.mubr.f32.mxu0 0.0
      %1679 = vmatmul.mubr.f32.gmra.mrb[0].mxu0 %v1496
      %v1680 = vpop.f32.mrb[0].mxu0
      %v1681 = vadd.f32 0.0, %v1680
      %v1682 = vpop.f32.mrb[0].mxu0
      %1683 = vmatprep.mubr.f32.mxu0 0.0
      %1684 = vmatmul.mubr.f32.gmra.mrb[0].mxu0 %v1499
      %v1685 = vpop.f32.mrb[0].mxu0
      %v1686 = vadd.f32 0.0, %v1685
      %v1687 = vpop.f32.mrb[0].mxu0
      %1688 = vmatprep.mubr.f32.mxu0 0.0
      %1689 = vmatmul.mubr.f32.gmra.mrb[0].mxu0 %v1502
      %v1690 = vpop.f32.mrb[0].mxu0
      %v1691 = vadd.f32 0.0, %v1690
      %v1692 = vpop.f32.mrb[0].mxu0
      %v1693 = vadd.f32 0.0, %v1692
      %1694 = vmatprep.mubr.f32.mxu0 0.0
      %1695 = vmatmul.mubr.f32.gmra.mrb[0].mxu0 %v1505
      %v1696 = vpop.f32.mrb[0].mxu0
      %v1697 = vadd.f32 0.0, %v1696
      %v1698 = vpop.f32.mrb[0].mxu0
      %v1699 = vadd.f32 0.0, %v1698
      %1700 = vmatprep.mubr.f32.mxu0 0.0
      %1701 = vmatmul.mubr.f32.gmra.mrb[0].mxu0 %v1508
      %v1702 = vpop.f32.mrb[0].mxu0
      %v1703 = vadd.f32 0.0, %v1702
      %v1704 = vpop.f32.mrb[0].mxu0
      %v1705 = vadd.f32 0.0, %v1704
      %1706 = vmatprep.mubr.f32.mxu0 0.0
      %1707 = vmatmul.mubr.f32.gmra.mrb[0].mxu0 %v1511
      %v1708 = vpop.f32.mrb[0].mxu0
      %v1709 = vadd.f32 0.0, %v1708
      %v1710 = vpop.f32.mrb[0].mxu0
      %v1711 = vadd.f32 0.0, %v1710
      %1712 = vdwg.mxu0
      %1721 = vrot.lane.b32.xlu0 %v1592, 110
      %v1722 = vpop.permute.xlu0 %1721
      %1723 = vrot.lane.b32.xlu0 %v1594, 110
      %v1724 = vpop.permute.xlu0 %1723
      %1725 = vrot.lane.b32.xlu0 %v1691, 110
      %v1726 = vpop.permute.xlu0 %1725
      %1727 = vrot.lane.b32.xlu0 %v1693, 110
      %v1728 = vpop.permute.xlu0 %1727
      %1729 = vrot.lane.b32.xlu0 %v1598, 110
      %v1730 = vpop.permute.xlu0 %1729
      %1731 = vrot.lane.b32.xlu0 %v1600, 110
      %v1732 = vpop.permute.xlu0 %1731
      %1733 = vrot.lane.b32.xlu0 %v1697, 110
      %v1734 = vpop.permute.xlu0 %1733
      %1735 = vrot.lane.b32.xlu0 %v1699, 110
      %v1736 = vpop.permute.xlu0 %1735
      %v1737 = vsel %vm814, %v1722, %v1724
      %v1738 = vsel %vm814, %v1724, %v1726
      %v1739 = vsel %vm814, %v1726, %v1728
      %v1740 = vsel %vm814, %v1730, %v1732
      %v1741 = vsel %vm814, %v1732, %v1734
      %v1742 = vsel %vm814, %v1734, %v1736
      %v1749 = vadd.f32 %v1580, %v1737
      %v1750 = vadd.f32 %v1582, %v1738
      %v1751 = vadd.f32 %v1681, %v1739
      %v1752 = vadd.f32 %v1586, %v1740
      %v1753 = vadd.f32 %v1588, %v1741
      %v1754 = vadd.f32 %v1686, %v1742
      %1763 = vrot.lane.b32.xlu0 %v1604, 92
      %v1764 = vpop.permute.xlu0 %1763
      %1765 = vrot.lane.b32.xlu0 %v1606, 92
      %v1766 = vpop.permute.xlu0 %1765
      %1767 = vrot.lane.b32.xlu0 %v1703, 92
      %v1768 = vpop.permute.xlu0 %1767
      %1769 = vrot.lane.b32.xlu0 %v1705, 92
      %v1770 = vpop.permute.xlu0 %1769
      %1771 = vrot.lane.b32.xlu0 %v1610, 92
      %v1772 = vpop.permute.xlu0 %1771
      %1773 = vrot.lane.b32.xlu0 %v1612, 92
      %v1774 = vpop.permute.xlu0 %1773
      %1775 = vrot.lane.b32.xlu0 %v1709, 92
      %v1776 = vpop.permute.xlu0 %1775
      %1777 = vrot.lane.b32.xlu0 %v1711, 92
      %v1778 = vpop.permute.xlu0 %1777
      %v1779 = vsel %vm878, %v1764, %v1766
      %v1780 = vsel %vm878, %v1766, %v1768
      %v1781 = vsel %vm878, %v1768, %v1770
      %v1782 = vsel %vm878, %v1772, %v1774
      %v1783 = vsel %vm878, %v1774, %v1776
      %v1784 = vsel %vm878, %v1776, %v1778
      %v1791 = vadd.f32 %v1749, %v1779
      %v1792 = vadd.f32 %v1750, %v1780
      %v1793 = vadd.f32 %v1751, %v1781
      %v1794 = vadd.f32 %v1752, %v1782
      %v1795 = vadd.f32 %v1753, %v1783
      %v1796 = vadd.f32 %v1754, %v1784
      %1798 = vset.pattern.permute.xlu0 0
      %1799 = vperm.xlu0 %1798, %v1417
      %v1800 = vpop.permute.xlu0 %1799
      %1803 = vset.pattern.permute.xlu0 0
      %1804 = vperm.xlu0 %1803, %v1418
      %v1805 = vpop.permute.xlu0 %1804
      %v1807 = vadd.f32 %v1791, %v1800
      %v1808 = vadd.f32 %v1792, %v1800
      %v1809 = vadd.f32 %v1793, %v1800
      %v1810 = vadd.f32 %v1794, %v1805
      %v1811 = vadd.f32 %v1795, %v1805
      %v1812 = vadd.f32 %v1796, %v1805
      %v1813 = vld [vmem:[%s2 + $0x30] sm:$0xff]
      %v1814 = vld [vmem:[%s3 + $0x58] sm:$0xff]
      %1816 = vset.pattern.permute.xlu0 0
      %1817 = vperm.xlu0 %1816, %v1814
      %v1818 = vpop.permute.xlu0 %1817
      %v1821 = vsel %vm955, %v1813, 0
      %1823 = vmatprep.subr.mxu0 %v1808
      %1824 = vmatpush1.msra.mxu0 %v1807
      %1825 = vmatprep.subr.mxu0 %v1811
      %1826 = vmatpush1.msra.mxu0 %v1810
      %1827 = vmatprep.subr.mxu0 0.0
      %1828 = vmatpush1.msra.mxu0 0.0
      %1829 = vmatprep.subr.mxu0 0.0
      %1830 = vmatpush1.msra.mxu0 0.0
      %1831 = vmatprep.subr.mxu0 0.0
      %1832 = vmatpush1.msra.mxu0 0.0
      %1833 = vmatprep.subr.mxu0 0.0
      %1834 = vmatpush1.msra.mxu0 0.0
      %1835 = vmatprep.subr.mxu0 0.0
      %1836 = vmatpush1.msra.mxu0 0.0
      %1837 = vmatprep.subr.mxu0 0.0
      %1838 = vmatpush1.msra.mxu0 0.0
      %1839 = vmatprep.subr.mxu0 0.0
      %1840 = vmatpush1.msra.mxu0 0.0
      %1841 = vmatprep.subr.mxu0 0.0
      %1842 = vmatpush1.msra.mxu0 0.0
      %1843 = vmatprep.subr.mxu0 0.0
      %1844 = vmatpush1.msra.mxu0 0.0
      %1845 = vmatprep.subr.mxu0 0.0
      %1846 = vmatpush1.msra.mxu0 0.0
      %1847 = vmatprep.subr.mxu0 0.0
      %1848 = vmatpush1.msra.mxu0 0.0
      %1849 = vmatprep.subr.mxu0 0.0
      %1850 = vmatpush1.msra.mxu0 0.0
      %1851 = vmatprep.subr.mxu0 0.0
      %1852 = vmatpush1.msra.mxu0 0.0
      %1853 = vmatprep.subr.mxu0 0.0
      %1854 = vmatpush1.msra.mxu0 0.0
      %1855 = vmatprep.subr.mxu0 0.0
      %1856 = vmatpush1.msra.mxu0 0.0
      %1857 = vmatprep.subr.mxu0 0.0
      %1858 = vmatpush1.msra.mxu0 0.0
      %1859 = vmatprep.subr.mxu0 0.0
      %1860 = vmatpush1.msra.mxu0 0.0
      %1861 = vmatprep.subr.mxu0 0.0
      %1862 = vmatpush1.msra.mxu0 0.0
      %1863 = vmatprep.subr.mxu0 0.0
      %1864 = vmatpush1.msra.mxu0 0.0
      %1865 = vmatprep.subr.mxu0 0.0
      %1866 = vmatpush1.msra.mxu0 0.0
      %1867 = vmatprep.subr.mxu0 0.0
      %1868 = vmatpush1.msra.mxu0 0.0
      %1869 = vmatprep.subr.mxu0 0.0
      %1870 = vmatpush1.msra.mxu0 0.0
      %1871 = vmatprep.subr.mxu0 0.0
      %1872 = vmatpush1.msra.mxu0 0.0
      %1873 = vmatprep.subr.mxu0 0.0
      %1874 = vmatpush1.msra.mxu0 0.0
      %1875 = vmatprep.subr.mxu0 0.0
      %1876 = vmatpush1.msra.mxu0 0.0
      %1877 = vmatprep.subr.mxu0 0.0
      %1878 = vmatpush1.msra.mxu0 0.0
      %1879 = vmatprep.subr.mxu0 0.0
      %1880 = vmatpush1.msra.mxu0 0.0
      %1881 = vmatprep.subr.mxu0 0.0
      %1882 = vmatpush1.msra.mxu0 0.0
      %1883 = vmatprep.subr.mxu0 0.0
      %1884 = vmatpush1.msra.mxu0 0.0
      %1885 = vmatprep.subr.mxu0 0.0
      %1886 = vmatpush1.msra.mxu0 0.0
      %1887 = vmatprep.mubr.f32.mxu0 0.0
      %1888 = vmatmul.mubr.f32.gmra.mrb[0].mxu0 %v1821
      %v1889 = vpop.f32.mrb[0].mxu0
      %v1890 = vadd.f32 %v1818, %v1889
      %v1891 = vpop.f32.mrb[0].mxu0
      %v1892 = vadd.f32 %v1818, %v1891
      %1893 = vdwg.mxu0
      %1894 = vmatprep.subr.mxu0 0.0
      %1895 = vmatpush1.msra.mxu0 %v1809
      %1896 = vmatprep.subr.mxu0 0.0
      %1897 = vmatpush1.msra.mxu0 %v1812
      %1898 = vmatprep.subr.mxu0 0.0
      %1899 = vmatpush1.msra.mxu0 0.0
      %1900 = vmatprep.subr.mxu0 0.0
      %1901 = vmatpush1.msra.mxu0 0.0
      %1902 = vmatprep.subr.mxu0 0.0
      %1903 = vmatpush1.msra.mxu0 0.0
      %1904 = vmatprep.subr.mxu0 0.0
      %1905 = vmatpush1.msra.mxu0 0.0
      %1906 = vmatprep.subr.mxu0 0.0
      %1907 = vmatpush1.msra.mxu0 0.0
      %1908 = vmatprep.subr.mxu0 0.0
      %1909 = vmatpush1.msra.mxu0 0.0
      %1910 = vmatprep.subr.mxu0 0.0
      %1911 = vmatpush1.msra.mxu0 0.0
      %1912 = vmatprep.subr.mxu0 0.0
      %1913 = vmatpush1.msra.mxu0 0.0
      %1914 = vmatprep.subr.mxu0 0.0
      %1915 = vmatpush1.msra.mxu0 0.0
      %1916 = vmatprep.subr.mxu0 0.0
      %1917 = vmatpush1.msra.mxu0 0.0
      %1918 = vmatprep.subr.mxu0 0.0
      %1919 = vmatpush1.msra.mxu0 0.0
      %1920 = vmatprep.subr.mxu0 0.0
      %1921 = vmatpush1.msra.mxu0 0.0
      %1922 = vmatprep.subr.mxu0 0.0
      %1923 = vmatpush1.msra.mxu0 0.0
      %1924 = vmatprep.subr.mxu0 0.0
      %1925 = vmatpush1.msra.mxu0 0.0
      %1926 = vmatprep.subr.mxu0 0.0
      %1927 = vmatpush1.msra.mxu0 0.0
      %1928 = vmatprep.subr.mxu0 0.0
      %1929 = vmatpush1.msra.mxu0 0.0
      %1930 = vmatprep.subr.mxu0 0.0
      %1931 = vmatpush1.msra.mxu0 0.0
      %1932 = vmatprep.subr.mxu0 0.0
      %1933 = vmatpush1.msra.mxu0 0.0
      %1934 = vmatprep.subr.mxu0 0.0
      %1935 = vmatpush1.msra.mxu0 0.0
      %1936 = vmatprep.subr.mxu0 0.0
      %1937 = vmatpush1.msra.mxu0 0.0
      %1938 = vmatprep.subr.mxu0 0.0
      %1939 = vmatpush1.msra.mxu0 0.0
      %1940 = vmatprep.subr.mxu0 0.0
      %1941 = vmatpush1.msra.mxu0 0.0
      %1942 = vmatprep.subr.mxu0 0.0
      %1943 = vmatpush1.msra.mxu0 0.0
      %1944 = vmatprep.subr.mxu0 0.0
      %1945 = vmatpush1.msra.mxu0 0.0
      %1946 = vmatprep.subr.mxu0 0.0
      %1947 = vmatpush1.msra.mxu0 0.0
      %1948 = vmatprep.subr.mxu0 0.0
      %1949 = vmatpush1.msra.mxu0 0.0
      %1950 = vmatprep.subr.mxu0 0.0
      %1951 = vmatpush1.msra.mxu0 0.0
      %1952 = vmatprep.subr.mxu0 0.0
      %1953 = vmatpush1.msra.mxu0 0.0
      %1954 = vmatprep.subr.mxu0 0.0
      %1955 = vmatpush1.msra.mxu0 0.0
      %1956 = vmatprep.subr.mxu0 0.0
      %1957 = vmatpush1.msra.mxu0 0.0
      %1958 = vmatprep.mubr.f32.mxu0 0.0
      %1959 = vmatmul.mubr.f32.gmra.mrb[0].mxu0 %v1821
      %v1960 = vpop.f32.mrb[0].mxu0
      %v1961 = vadd.f32 %v1818, %v1960
      %v1962 = vpop.f32.mrb[0].mxu0
      %1963 = vdwg.mxu0
      %v1964 = vadd.f32 %v1408, %v1890
      %v1965 = vadd.f32 %v1409, %v1892
      %v1966 = vadd.f32 %v1410, %v1961
      %v1967 = vld [vmem:[#allocation2 + $0x80] sm:$0xff]
      %v1968 = vld [vmem:[#allocation2 + $0x88] sm:$0xff]
      %v1969 = vld [vmem:[#allocation2 + $0x90] sm:$0xff]
      %v1970 = vld [vmem:[#allocation2 + $0x98] sm:$0xff]
      %1975 = vrot.lane.b32.xlu0 %v1967, 111
      %v1976 = vpop.permute.xlu0 %1975
      %1977 = vrot.lane.b32.xlu0 %v1968, 111
      %v1978 = vpop.permute.xlu0 %1977
      %1979 = vrot.lane.b32.xlu0 %v1969, 111
      %v1980 = vpop.permute.xlu0 %1979
      %1981 = vrot.lane.b32.xlu0 %v1970, 111
      %v1982 = vpop.permute.xlu0 %1981
      %vm1983 = vcmask 908288
      %v1984 = vsel %vm1983, %v1976, %v1978
      %v1985 = vsel %vm1983, %v1978, %v1980
      %v1986 = vsel %vm1983, %v1980, %v1982
      %v1991 = vadd.f32 %v1967, %v1984
      %v1992 = vadd.f32 %v1968, %v1985
      %v1993 = vadd.f32 %v1969, %v1986
      %v1994 = vadd.f32 %v1970, %v1982
      %1995 = vrot.lane.b32.xlu0 %v1967, 109
      %v1996 = vpop.permute.xlu0 %1995
      %1997 = vrot.lane.b32.xlu0 %v1968, 109
      %v1998 = vpop.permute.xlu0 %1997
      %1999 = vrot.lane.b32.xlu0 %v1969, 109
      %v2000 = vpop.permute.xlu0 %1999
      %2001 = vrot.lane.b32.xlu0 %v1970, 109
      %v2002 = vpop.permute.xlu0 %2001
      %v2003 = vsel %vm938, %v1996, %v1998
      %v2004 = vsel %vm938, %v1998, %v2000
      %v2005 = vsel %vm938, %v2000, %v2002
      %v2010 = vadd.f32 %v1991, %v2003
      %v2011 = vadd.f32 %v1992, %v2004
      %v2012 = vadd.f32 %v1993, %v2005
      %v2013 = vadd.f32 %v1994, %v2002
      %2014 = vrot.lane.b32.xlu0 %v1967, 92
      %v2015 = vpop.permute.xlu0 %2014
      %2016 = vrot.lane.b32.xlu0 %v1968, 92
      %v2017 = vpop.permute.xlu0 %2016
      %2018 = vrot.lane.b32.xlu0 %v1969, 92
      %v2019 = vpop.permute.xlu0 %2018
      %2020 = vrot.lane.b32.xlu0 %v1970, 92
      %v2021 = vpop.permute.xlu0 %2020
      %v2022 = vsel %vm878, %v2015, %v2017
      %v2023 = vsel %vm878, %v2017, %v2019
      %v2024 = vsel %vm878, %v2019, %v2021
      %v2029 = vadd.f32 %v2010, %v2022
      %v2030 = vadd.f32 %v2011, %v2023
      %v2031 = vadd.f32 %v2012, %v2024
      %v2032 = vadd.f32 %v2013, %v2021
      %v2033 = vmul.f32 %v1967, 4.0
      %v2034 = vmul.f32 %v1968, 4.0
      %v2035 = vmul.f32 %v1969, 4.0
      %v2036 = vmul.f32 %v1970, 4.0
      %2041 = vrot.lane.b32.xlu0 %v2033, 110
      %v2042 = vpop.permute.xlu0 %2041
      %2043 = vrot.lane.b32.xlu0 %v2034, 110
      %v2044 = vpop.permute.xlu0 %2043
      %2045 = vrot.lane.b32.xlu0 %v2035, 110
      %v2046 = vpop.permute.xlu0 %2045
      %2047 = vrot.lane.b32.xlu0 %v2036, 110
      %v2048 = vpop.permute.xlu0 %2047
      %v2049 = vsel %vm814, %v2042, %v2044
      %v2050 = vsel %vm814, %v2044, %v2046
      %v2051 = vsel %vm814, %v2046, %v2048
      %v2056 = vsub.f32 %v2029, %v2049
      %v2057 = vsub.f32 %v2030, %v2050
      %v2058 = vsub.f32 %v2031, %v2051
      %v2059 = vsub.f32 %v2032, %v2048
      %v2060 = vld [vmem:[%s3 + $0x68] sm:$0xff]
      %2062 = vset.pattern.permute.xlu0 0
      %2063 = vperm.xlu0 %2062, %v2060
      %v2064 = vpop.permute.xlu0 %2063
      %v2066 = vmul.f32 %v2056, %v2064
      %v2067 = vmul.f32 %v2057, %v2064
      %v2068 = vmul.f32 %v2058, %v2064
      %v2069 = vmul.f32 %v2059, %v2064
      %2074 = vrot.lane.b32.xlu0 %v2066, 127
      %v2075 = vpop.permute.xlu0 %2074
      %2076 = vrot.lane.b32.xlu0 %v2067, 127
      %v2077 = vpop.permute.xlu0 %2076
      %2078 = vrot.lane.b32.xlu0 %v2068, 127
      %v2079 = vpop.permute.xlu0 %2078
      %2080 = vrot.lane.b32.xlu0 %v2069, 127
      %v2081 = vpop.permute.xlu0 %2080
      %v2082 = vsel %vm491, %v2075, %v2077
      %v2083 = vsel %vm491, %v2077, %v2079
      %v2084 = vsel %vm491, %v2079, %v2081
      %v2088 = vadd.f32 %v1964, %v2082
      %v2089 = vadd.f32 %v1965, %v2083
      %v2090 = vadd.f32 %v1966, %v2084
      %v2091 = vld [vmem:[%s3 + $0x70] sm:$0xff]
      %2093 = vset.pattern.permute.xlu0 0
      %2094 = vperm.xlu0 %2093, %v2091
      %v2095 = vpop.permute.xlu0 %2094
      %v2097 = vadd.f32 %v2088, %v2095
      %v2098 = vadd.f32 %v2089, %v2095
      %v2099 = vadd.f32 %v2090, %v2095
      %2100 = vst [vmem:[%s197] sm:$0xff] %v2097
      %2101 = vst [vmem:[%s197 + $0x8] sm:$0xff] %v2098
      %2102 = vst [vmem:[%s197 + $0x10] sm:$0xff] %v2099
      %p2103 = scmp.lt.s32.totalorder %s15, 1
      %s2104 = scalar_select %p2103, %s15, 1
      %s2105 = smul.addr %s2104, 3
      %s2106 = smul.addr %s2105, 8
      %s2107 = scalar_lea.vmem %s4, %s2106
      // Predicated region
      $region37: #{rbx2sr_forward.1} parent=35 // pred_check
        %p2108 = pneg %p122
      $region38: #{rbx2sr_forward.1} parent=35 // pred_check_branch
        %2110 = sbr.rel (%p2108) target = $region40
      $region39: #{rbx2sr_forward.1} parent=35 // pred_region
        _
      $region40: #{rbx2sr_forward.1} parent=35 // pred_fallthru
        _
    $region36: #{rbx2sr_forward.1} parent=5 // pred_fallthru
      _
    %p2111 = scmp.le.s32.totalorder 2, %s10
    // Predicated region
    $region41: #{rbx2sr_forward.1} parent=5 // pred_check
      %p2112 = pneg %p2111
    $region42: #{rbx2sr_forward.1} parent=5 // pred_check_branch
      %2114 = sbr.rel (%p2112) target = $region44
    $region43: #{rbx2sr_forward.1} parent=5 // pred_region
      %s2115 = ssub.s32 %s10, 2
      // Predicated region
      $region45: #{rbx2sr_forward.1} parent=43 // pred_check
        %p2116 = pneg %p128
      $region46: #{rbx2sr_forward.1} parent=43 // pred_check_branch
        %2118 = sbr.rel (%p2116) target = $region48
      $region47: #{rbx2sr_forward.1} parent=43 // pred_region
        %p2119 = scmp.lt.s32.totalorder %s16, 1
        %s2120 = scalar_select %p2119, %s16, 1
        %s2121 = smul.addr %s2120, 3
        %s2122 = smul.addr %s2121, 8
        %s2123 = scalar_lea.vmem %s4, %s2122
      $region48: #{rbx2sr_forward.1} parent=43 // pred_fallthru
        _
    $region44: #{rbx2sr_forward.1} parent=5 // pred_fallthru
      _
  $region6: #{rbx2sr_forward.1} parent=0 // loop_footer
    %s14 = sadd.s32 1, %s10
  $region7: #{rbx2sr_forward.1} parent=0 // loop_footer_branch
    %9 = sbr.rel target = $region3
  $region8: #{rbx2sr_forward.1} parent=0 // loop_exit
    _

</llo_original>
